<compile_context>
chip_gen: v5e
topology: v5e:2x2
jax: 0.10.0
libtpu: 0.0.40
codegen_flags: <defaults>
</compile_context>

<pallas_src>
import jax
import jax.numpy as jnp
from jax.experimental import pallas as pl
from jax.experimental.pallas import tpu as pltpu

BN_EPS = 1e-5


def _round_up(x, n):
    return (x + n - 1) // n * n


def _vmem_limit_bytes():
    """Generation-aware scoped-VMEM limit: ~64 MiB on 128 MiB chips (v5e/v6e),
    ~48 MiB on 64 MiB chips (v7x). Conservative fallback if the query fails."""
    cap = 64 * 1024 * 1024
    try:
        cap = int(pltpu.get_tpu_info().vmem_capacity_bytes)
    except Exception:
        pass
    return min(64 * 1024 * 1024, (cap * 3) // 4)


def _pick_tile_rows(h_out, w_out, cin, cp, kh, wp, target_tm, budget_bytes):
    """Pick output-row-block TR: divides H_out, TR*W_out sublane-aligned,
    TR*W_out <= target_tm, and the estimated double-buffered tile fits VMEM."""
    def est(tr):
        tm = tr * w_out
        x_blk = (tr + kh - 1) * wp * cin * 2       # bf16 halo'd input block
        conv_blk = tm * cp * 2                     # bf16 conv output tile
        acc = tm * cp * 4                          # f32 accumulator value
        tap_tmp = 4 * tm * cin * 2                 # sliced/reshaped tap copies
        return 2 * x_blk + 2 * conv_blk + acc + tap_tmp

    divisors = [t for t in range(1, h_out + 1) if h_out % t == 0]
    feas16 = [t for t in divisors if (t * w_out) % 16 == 0 and est(t) <= budget_bytes]
    feas8 = [t for t in divisors if (t * w_out) % 8 == 0 and est(t) <= budget_bytes]
    feasible = feas16 if feas16 else feas8
    if not feasible:
        # TODO(synk): add masked/padded M tiling for odd spatial shapes.
        raise ValueError(f"no feasible row tile for H_out={h_out}, W_out={w_out}")
    under = [t for t in feasible if t * w_out <= target_tm]
    return max(under) if under else min(feasible)


def _make_conv_stats_kernel(tr, w_out, kh, kw, cin, cp):
    """Pass 1: in-kernel im2col (KH*KW shifted matmuls) + per-channel stats."""
    tm = tr * w_out

    def kernel(x_ref, w_ref, conv_ref, sum_ref, sq_ref):
        # x_ref:    (tr+kh-1, Wp, Cin) bf16   halo'd input row block (one image)
        # w_ref:    (kh*kw, Cin, Cp)   bf16   tap-major weights (VMEM-resident)
        # conv_ref: (tm, Cp)           bf16   conv output tile
        # sum_ref:  (1, Cp)            f32    per-batch channel sum (resident over r)
        # sq_ref:   (1, Cp)            f32    per-batch channel sum of squares
        @pl.when(pl.program_id(1) == 0)
        def _():
            sum_ref[...] = jnp.zeros_like(sum_ref)
            sq_ref[...] = jnp.zeros_like(sq_ref)

        x = x_ref[...]                                   # load halo'd block once
        acc = jnp.zeros((tm, cp), jnp.float32)
        for i in range(kh):                              # unrolled 3x3 tap loop
            for j in range(kw):
                tap = x[i:i + tr, j:j + w_out, :].reshape(tm, cin)
                acc += jnp.dot(tap, w_ref[i * kw + j],
                               preferred_element_type=jnp.float32)

        conv_ref[...] = acc.astype(conv_ref.dtype)       # bf16 intermediate
        # Stats from the f32 accumulator; two separate row writes (no concat).
        sum_ref[...] += jnp.sum(acc, axis=0, keepdims=True)
        sq_ref[...] += jnp.sum(acc * acc, axis=0, keepdims=True)

    return kernel


def bn_relu_kernel(conv_ref, scale_ref, shift_ref, o_ref):
    """Pass 2: y = relu(conv * scale + shift) with the BN affine folded (f32 math)."""
    y = conv_ref[...].astype(jnp.float32) * scale_ref[...] + shift_ref[...]
    o_ref[...] = jnp.maximum(y, 0.0)


def conv_block_forward(x_nchw, w_oihw, gamma, beta, *, stride=1, padding=1,
                       target_tm=1024):
    """PyTorch-semantics forward of ConvBlock (training-mode BN). x: (N,Cin,H,W) f32."""
    n, cin, h, w = x_nchw.shape
    cout, cin_w, kh, kw = w_oihw.shape
    assert cin_w == cin
    if stride != 1:
        raise NotImplementedError("TODO(synk): strided conv tap slicing")

    hp, wp = h + 2 * padding, w + 2 * padding
    h_out = hp - kh + 1
    w_out = wp - kw + 1
    m = n * h_out * w_out
    halo = kh - 1

    cp = _round_up(cout, 128)                 # lane-dense channel dim
    vmem_limit = _vmem_limit_bytes()
    budget = (vmem_limit * 3) // 5            # headroom for weights/stats/pipeline
    tr = _pick_tile_rows(h_out, w_out, cin, cp, kh, wp, target_tm, budget)
    r_blocks = h_out // tr
    tm = tr * w_out

    # ---- glue: padded NHWC, re-blocked into halo'd row windows (bf16) ----
    # ~(1 + halo/tr)x the input size, instead of the previous 9x im2col tensor.
    x_nhwc = jnp.transpose(x_nchw, (0, 2, 3, 1))
    xp = jnp.pad(x_nhwc, ((0, 0), (padding, padding), (padding, padding), (0, 0)))
    xp = xp.astype(jnp.bfloat16)
    x_blocks = jnp.stack(
        [xp[:, rb * tr: rb * tr + tr + halo] for rb in range(r_blocks)], axis=1
    )                                          # (N, R, tr+halo, Wp, Cin)

    # OIHW -> tap-major (kh*kw, Cin, Cp), zero-padded Cout, bf16.
    w_taps = jnp.transpose(w_oihw, (2, 3, 1, 0)).reshape(kh * kw, cin, cout)
    w_taps = jnp.pad(w_taps, ((0, 0), (0, 0), (0, cp - cout))).astype(jnp.bfloat16)

    conv_kernel = _make_conv_stats_kernel(tr, w_out, kh, kw, cin, cp)

    # ---- pass 1: conv (in-kernel im2col) + per-batch channel stats ----
    conv_flat, b_sum, b_sq = pl.pallas_call(
        conv_kernel,
        grid=(n, r_blocks),
        in_specs=[
            pl.BlockSpec((None, None, tr + halo, wp, cin),
                         lambda b, r: (b, r, 0, 0, 0)),
            pl.BlockSpec((kh * kw, cin, cp), lambda b, r: (0, 0, 0)),  # resident
        ],
        out_specs=(
            pl.BlockSpec((tm, cp), lambda b, r: (b * r_blocks + r, 0)),
            pl.BlockSpec((None, 1, cp), lambda b, r: (b, 0, 0)),  # per-batch slab
            pl.BlockSpec((None, 1, cp), lambda b, r: (b, 0, 0)),
        ),
        out_shape=(
            jax.ShapeDtypeStruct((m, cp), jnp.bfloat16),          # bf16 intermediate
            jax.ShapeDtypeStruct((n, 1, cp), jnp.float32),
            jax.ShapeDtypeStruct((n, 1, cp), jnp.float32),
        ),
        compiler_params=pltpu.CompilerParams(
            # batch axis "parallel": per-batch stats slabs let v7x's two TCs
            # shard pass 1; reduction (row-block) axis stays "arbitrary".
            dimension_semantics=("parallel", "arbitrary"),
            vmem_limit_bytes=vmem_limit,
        ),
    )(x_blocks, w_taps)

    # ---- tiny (Cp,) glue: fold batch stats into BN affine scale/shift ----
    ch_sum = jnp.sum(b_sum[:, 0, :], axis=0)
    ch_sq = jnp.sum(b_sq[:, 0, :], axis=0)
    mean = ch_sum / m
    var = jnp.maximum(ch_sq / m - mean * mean, 0.0)   # clamp cancellation
    inv = jax.lax.rsqrt(var + BN_EPS)
    gamma_p = jnp.pad(gamma.astype(jnp.float32), (0, cp - cout))
    beta_p = jnp.pad(beta.astype(jnp.float32), (0, cp - cout))
    scale = (gamma_p * inv).reshape(1, cp)
    shift = (beta_p - mean * gamma_p * inv).reshape(1, cp)

    # ---- pass 2: normalize + ReLU; group tiles into bigger streaming blocks ----
    n_tiles = n * r_blocks
    g_best = 1
    for g in range(1, n_tiles + 1):
        if n_tiles % g:
            continue
        tm_cand = g * tm
        if tm_cand > 2048 or tm_cand * cp * 12 > budget:
            continue
        g_best = max(g_best, g)
    tm2 = tm * g_best
    grid2 = n_tiles // g_best

    out_flat = pl.pallas_call(
        bn_relu_kernel,
        grid=(grid2,),
        in_specs=[
            pl.BlockSpec((tm2, cp), lambda i: (i, 0)),
            pl.BlockSpec((1, cp), lambda i: (0, 0)),
            pl.BlockSpec((1, cp), lambda i: (0, 0)),
        ],
        out_specs=pl.BlockSpec((tm2, cp), lambda i: (i, 0)),
        out_shape=jax.ShapeDtypeStruct((m, cp), jnp.float32),
        compiler_params=pltpu.CompilerParams(
            dimension_semantics=("parallel",),
            vmem_limit_bytes=vmem_limit,
        ),
    )(conv_flat, scale, shift)

    # TODO(synk): if the consumer accepts NHWC, drop this transpose (extra HBM pass).
    out = out_flat.reshape(n, h_out, w_out, cp)[:, :, :, :cout]
    return jnp.transpose(out, (0, 3, 1, 2))


def reference_forward(x, w, gamma, beta, *, stride=1, padding=1):
    """Pure-JAX reference matching PyTorch ConvBlock.forward (training-mode BN)."""
    conv = jax.lax.conv_general_dilated(
        x, w, window_strides=(stride, stride),
        padding=[(padding, padding), (padding, padding)],
        dimension_numbers=("NCHW", "OIHW", "NCHW"),
        precision=jax.lax.Precision.HIGHEST)
    mean = conv.mean(axis=(0, 2, 3), keepdims=True)
    var = ((conv - mean) ** 2).mean(axis=(0, 2, 3), keepdims=True)
    g = gamma.reshape(1, -1, 1, 1)
    b = beta.reshape(1, -1, 1, 1)
    out = (conv - mean) * jax.lax.rsqrt(var + BN_EPS) * g + b
    return jnp.maximum(out, 0.0)


if __name__ == "__main__":
    # Small, deterministic shapes: N=2, Cin=4, Cout=8, H=W=16, k=3, s=1, p=1.
    key = jax.random.PRNGKey(0)
    kx, kw_, kg, kb = jax.random.split(key, 4)

    N, CIN, COUT, H, W = 2, 4, 8, 16, 16
    x = jax.random.normal(kx, (N, CIN, H, W), dtype=jnp.float32)
    # Conv2d(in, out, 3, bias=False): weight (Cout, Cin, 3, 3) — synthetic init.
    conv_w = jax.random.normal(kw_, (COUT, CIN, 3, 3), dtype=jnp.float32) * 0.1
    # Non-trivial BN affine to exercise the folded scale/shift path.
    gamma = 1.0 + 0.1 * jax.random.normal(kg, (COUT,), dtype=jnp.float32)
    beta = 0.1 * jax.random.normal(kb, (COUT,), dtype=jnp.float32)

    # target_tm=128 -> 8-row blocks, 2 per image: exercises cross-tile BN stats.
    out = conv_block_forward(x, conv_w, gamma, beta, target_tm=128)
    out = jax.block_until_ready(out)

    ref = reference_forward(x, conv_w, gamma, beta)
    assert out.shape == (N, COUT, H, W), out.shape
    # bf16 MXU operands vs f32 HIGHEST reference -> slightly looser tolerance.
    err = float(jnp.max(jnp.abs(out - ref)))
    assert jnp.allclose(out, ref, rtol=2e-2, atol=2e-2), err

    print("KERNEL_OK")
</pallas_src>

<mosaic_0001>
module attributes {stable_mosaic.version = 11 : i64} {
  func.func @kernel(%arg0: i32, %arg1: i32, %arg2: memref<1x1x10x18x4xbf16, #tpu.memory_space<vmem>>, %arg3: memref<9x4x128xbf16, #tpu.memory_space<vmem>>, %arg4: memref<128x128xbf16, #tpu.memory_space<vmem>>, %arg5: memref<1x1x128xf32, #tpu.memory_space<vmem>>, %arg6: memref<1x1x128xf32, #tpu.memory_space<vmem>>) attributes {dimension_semantics = [#tpu.dimension_semantics<parallel>, #tpu.dimension_semantics<arbitrary>], iteration_bounds = array<i64: 2, 2>, scalar_prefetch = 0 : i64, scratch_operands = 0 : i64, tpu.core_type = #tpu.core_type<tc>, window_params = [{transform_indices = @transform_0, window_bounds = array<i64: 1, 1, 10, 18, 4>}, {pipeline_mode = #tpu.pipeline_mode<synchronous>, transform_indices = @transform_1, window_bounds = array<i64: 9, 4, 128>}, {transform_indices = @transform_2, window_bounds = array<i64: 128, 128>}, {transform_indices = @transform_3, window_bounds = array<i64: 1, 1, 128>}, {transform_indices = @transform_4, window_bounds = array<i64: 1, 1, 128>}]} {
    %c0_i32 = arith.constant 0 : i32
    %0 = arith.cmpi eq, %arg1, %c0_i32 : i32
    %1 = arith.extui %0 : i1 to i32
    %c0_i32_0 = arith.constant 0 : i32
    %2 = arith.cmpi ne, %1, %c0_i32_0 : i32
    scf.if %2 {
      %cst_49 = arith.constant 0.000000e+00 : f32
      %79 = vector.broadcast %cst_49 : f32 to vector<1x128xf32>
      %c0_50 = arith.constant 0 : index
      %c0_51 = arith.constant 0 : index
      %c0_52 = arith.constant 0 : index
      %80 = vector.load %arg5[%c0_50, %c0_51, %c0_52] : memref<1x1x128xf32, #tpu.memory_space<vmem>>, vector<1x1x128xf32>
      %81 = vector.shape_cast %80 : vector<1x1x128xf32> to vector<1x128xf32>
      %82 = vector.shape_cast %79 : vector<1x128xf32> to vector<1x1x128xf32>
      tpu.vector_store %arg5[%c0_50, %c0_51, %c0_52], %82 {strides = array<i32>} : memref<1x1x128xf32, #tpu.memory_space<vmem>>, vector<1x1x128xf32>,
      %cst_53 = arith.constant 0.000000e+00 : f32
      %83 = vector.broadcast %cst_53 : f32 to vector<1x128xf32>
      %c0_54 = arith.constant 0 : index
      %c0_55 = arith.constant 0 : index
      %c0_56 = arith.constant 0 : index
      %84 = vector.load %arg6[%c0_54, %c0_55, %c0_56] : memref<1x1x128xf32, #tpu.memory_space<vmem>>, vector<1x1x128xf32>
      %85 = vector.shape_cast %84 : vector<1x1x128xf32> to vector<1x128xf32>
      %86 = vector.shape_cast %83 : vector<1x128xf32> to vector<1x1x128xf32>
      tpu.vector_store %arg6[%c0_54, %c0_55, %c0_56], %86 {strides = array<i32>} : memref<1x1x128xf32, #tpu.memory_space<vmem>>, vector<1x1x128xf32>,
    } else {
    }
    %c0 = arith.constant 0 : index
    %c0_1 = arith.constant 0 : index
    %c0_2 = arith.constant 0 : index
    %c0_3 = arith.constant 0 : index
    %c0_4 = arith.constant 0 : index
    %3 = vector.load %arg2[%c0, %c0_1, %c0_2, %c0_3, %c0_4] : memref<1x1x10x18x4xbf16, #tpu.memory_space<vmem>>, vector<1x1x10x18x4xbf16>
    %4 = vector.shape_cast %3 : vector<1x1x10x18x4xbf16> to vector<10x18x4xbf16>
    %cst = arith.constant 0.000000e+00 : f32
    %5 = vector.broadcast %cst : f32 to vector<128x128xf32>
    %6 = vector.extract_strided_slice %4 {offsets = [0, 0, 0], sizes = [8, 16, 4], strides = [1, 1, 1]} : vector<10x18x4xbf16> to vector<8x16x4xbf16>
    %7 = vector.shape_cast %6 : vector<8x16x4xbf16> to vector<128x4xbf16>
    %c0_5 = arith.constant 0 : index
    %c0_6 = arith.constant 0 : index
    %c0_7 = arith.constant 0 : index
    %8 = vector.load %arg3[%c0_5, %c0_6, %c0_7] : memref<9x4x128xbf16, #tpu.memory_space<vmem>>, vector<1x4x128xbf16>
    %9 = vector.shape_cast %8 : vector<1x4x128xbf16> to vector<4x128xbf16>
    %cst_8 = arith.constant dense<0.000000e+00> : vector<128x128xf32>
    %10 = tpu.matmul %7, %9, %cst_8 {dimension_numbers = #tpu.dot_dimension_numbers<[1], [0], [0], [1], [0, 0, 1, 1], [], []>} : vector<128x4xbf16>, vector<4x128xbf16>, vector<128x128xf32> -> vector<128x128xf32>
    %11 = arith.addf %5, %10 : vector<128x128xf32>
    %12 = vector.extract_strided_slice %4 {offsets = [0, 1, 0], sizes = [8, 16, 4], strides = [1, 1, 1]} : vector<10x18x4xbf16> to vector<8x16x4xbf16>
    %13 = vector.shape_cast %12 : vector<8x16x4xbf16> to vector<128x4xbf16>
    %c1 = arith.constant 1 : index
    %c0_9 = arith.constant 0 : index
    %c0_10 = arith.constant 0 : index
    %14 = vector.load %arg3[%c1, %c0_9, %c0_10] : memref<9x4x128xbf16, #tpu.memory_space<vmem>>, vector<1x4x128xbf16>
    %15 = vector.shape_cast %14 : vector<1x4x128xbf16> to vector<4x128xbf16>
    %cst_11 = arith.constant dense<0.000000e+00> : vector<128x128xf32>
    %16 = tpu.matmul %13, %15, %cst_11 {dimension_numbers = #tpu.dot_dimension_numbers<[1], [0], [0], [1], [0, 0, 1, 1], [], []>} : vector<128x4xbf16>, vector<4x128xbf16>, vector<128x128xf32> -> vector<128x128xf32>
    %17 = arith.addf %11, %16 : vector<128x128xf32>
    %18 = vector.extract_strided_slice %4 {offsets = [0, 2, 0], sizes = [8, 16, 4], strides = [1, 1, 1]} : vector<10x18x4xbf16> to vector<8x16x4xbf16>
    %19 = vector.shape_cast %18 : vector<8x16x4xbf16> to vector<128x4xbf16>
    %c2 = arith.constant 2 : index
    %c0_12 = arith.constant 0 : index
    %c0_13 = arith.constant 0 : index
    %20 = vector.load %arg3[%c2, %c0_12, %c0_13] : memref<9x4x128xbf16, #tpu.memory_space<vmem>>, vector<1x4x128xbf16>
    %21 = vector.shape_cast %20 : vector<1x4x128xbf16> to vector<4x128xbf16>
    %cst_14 = arith.constant dense<0.000000e+00> : vector<128x128xf32>
    %22 = tpu.matmul %19, %21, %cst_14 {dimension_numbers = #tpu.dot_dimension_numbers<[1], [0], [0], [1], [0, 0, 1, 1], [], []>} : vector<128x4xbf16>, vector<4x128xbf16>, vector<128x128xf32> -> vector<128x128xf32>
    %23 = arith.addf %17, %22 : vector<128x128xf32>
    %24 = vector.extract_strided_slice %4 {offsets = [1, 0, 0], sizes = [8, 16, 4], strides = [1, 1, 1]} : vector<10x18x4xbf16> to vector<8x16x4xbf16>
    %25 = vector.shape_cast %24 : vector<8x16x4xbf16> to vector<128x4xbf16>
    %c3 = arith.constant 3 : index
    %c0_15 = arith.constant 0 : index
    %c0_16 = arith.constant 0 : index
    %26 = vector.load %arg3[%c3, %c0_15, %c0_16] : memref<9x4x128xbf16, #tpu.memory_space<vmem>>, vector<1x4x128xbf16>
    %27 = vector.shape_cast %26 : vector<1x4x128xbf16> to vector<4x128xbf16>
    %cst_17 = arith.constant dense<0.000000e+00> : vector<128x128xf32>
    %28 = tpu.matmul %25, %27, %cst_17 {dimension_numbers = #tpu.dot_dimension_numbers<[1], [0], [0], [1], [0, 0, 1, 1], [], []>} : vector<128x4xbf16>, vector<4x128xbf16>, vector<128x128xf32> -> vector<128x128xf32>
    %29 = arith.addf %23, %28 : vector<128x128xf32>
    %30 = vector.extract_strided_slice %4 {offsets = [1, 1, 0], sizes = [8, 16, 4], strides = [1, 1, 1]} : vector<10x18x4xbf16> to vector<8x16x4xbf16>
    %31 = vector.shape_cast %30 : vector<8x16x4xbf16> to vector<128x4xbf16>
    %c4 = arith.constant 4 : index
    %c0_18 = arith.constant 0 : index
    %c0_19 = arith.constant 0 : index
    %32 = vector.load %arg3[%c4, %c0_18, %c0_19] : memref<9x4x128xbf16, #tpu.memory_space<vmem>>, vector<1x4x128xbf16>
    %33 = vector.shape_cast %32 : vector<1x4x128xbf16> to vector<4x128xbf16>
    %cst_20 = arith.constant dense<0.000000e+00> : vector<128x128xf32>
    %34 = tpu.matmul %31, %33, %cst_20 {dimension_numbers = #tpu.dot_dimension_numbers<[1], [0], [0], [1], [0, 0, 1, 1], [], []>} : vector<128x4xbf16>, vector<4x128xbf16>, vector<128x128xf32> -> vector<128x128xf32>
    %35 = arith.addf %29, %34 : vector<128x128xf32>
    %36 = vector.extract_strided_slice %4 {offsets = [1, 2, 0], sizes = [8, 16, 4], strides = [1, 1, 1]} : vector<10x18x4xbf16> to vector<8x16x4xbf16>
    %37 = vector.shape_cast %36 : vector<8x16x4xbf16> to vector<128x4xbf16>
    %c5 = arith.constant 5 : index
    %c0_21 = arith.constant 0 : index
    %c0_22 = arith.constant 0 : index
    %38 = vector.load %arg3[%c5, %c0_21, %c0_22] : memref<9x4x128xbf16, #tpu.memory_space<vmem>>, vector<1x4x128xbf16>
    %39 = vector.shape_cast %38 : vector<1x4x128xbf16> to vector<4x128xbf16>
    %cst_23 = arith.constant dense<0.000000e+00> : vector<128x128xf32>
    %40 = tpu.matmul %37, %39, %cst_23 {dimension_numbers = #tpu.dot_dimension_numbers<[1], [0], [0], [1], [0, 0, 1, 1], [], []>} : vector<128x4xbf16>, vector<4x128xbf16>, vector<128x128xf32> -> vector<128x128xf32>
    %41 = arith.addf %35, %40 : vector<128x128xf32>
    %42 = vector.extract_strided_slice %4 {offsets = [2, 0, 0], sizes = [8, 16, 4], strides = [1, 1, 1]} : vector<10x18x4xbf16> to vector<8x16x4xbf16>
    %43 = vector.shape_cast %42 : vector<8x16x4xbf16> to vector<128x4xbf16>
    %c6 = arith.constant 6 : index
    %c0_24 = arith.constant 0 : index
    %c0_25 = arith.constant 0 : index
    %44 = vector.load %arg3[%c6, %c0_24, %c0_25] : memref<9x4x128xbf16, #tpu.memory_space<vmem>>, vector<1x4x128xbf16>
    %45 = vector.shape_cast %44 : vector<1x4x128xbf16> to vector<4x128xbf16>
    %cst_26 = arith.constant dense<0.000000e+00> : vector<128x128xf32>
    %46 = tpu.matmul %43, %45, %cst_26 {dimension_numbers = #tpu.dot_dimension_numbers<[1], [0], [0], [1], [0, 0, 1, 1], [], []>} : vector<128x4xbf16>, vector<4x128xbf16>, vector<128x128xf32> -> vector<128x128xf32>
    %47 = arith.addf %41, %46 : vector<128x128xf32>
    %48 = vector.extract_strided_slice %4 {offsets = [2, 1, 0], sizes = [8, 16, 4], strides = [1, 1, 1]} : vector<10x18x4xbf16> to vector<8x16x4xbf16>
    %49 = vector.shape_cast %48 : vector<8x16x4xbf16> to vector<128x4xbf16>
    %c7 = arith.constant 7 : index
    %c0_27 = arith.constant 0 : index
    %c0_28 = arith.constant 0 : index
    %50 = vector.load %arg3[%c7, %c0_27, %c0_28] : memref<9x4x128xbf16, #tpu.memory_space<vmem>>, vector<1x4x128xbf16>
    %51 = vector.shape_cast %50 : vector<1x4x128xbf16> to vector<4x128xbf16>
    %cst_29 = arith.constant dense<0.000000e+00> : vector<128x128xf32>
    %52 = tpu.matmul %49, %51, %cst_29 {dimension_numbers = #tpu.dot_dimension_numbers<[1], [0], [0], [1], [0, 0, 1, 1], [], []>} : vector<128x4xbf16>, vector<4x128xbf16>, vector<128x128xf32> -> vector<128x128xf32>
    %53 = arith.addf %47, %52 : vector<128x128xf32>
    %54 = vector.extract_strided_slice %4 {offsets = [2, 2, 0], sizes = [8, 16, 4], strides = [1, 1, 1]} : vector<10x18x4xbf16> to vector<8x16x4xbf16>
    %55 = vector.shape_cast %54 : vector<8x16x4xbf16> to vector<128x4xbf16>
    %c8 = arith.constant 8 : index
    %c0_30 = arith.constant 0 : index
    %c0_31 = arith.constant 0 : index
    %56 = vector.load %arg3[%c8, %c0_30, %c0_31] : memref<9x4x128xbf16, #tpu.memory_space<vmem>>, vector<1x4x128xbf16>
    %57 = vector.shape_cast %56 : vector<1x4x128xbf16> to vector<4x128xbf16>
    %cst_32 = arith.constant dense<0.000000e+00> : vector<128x128xf32>
    %58 = tpu.matmul %55, %57, %cst_32 {dimension_numbers = #tpu.dot_dimension_numbers<[1], [0], [0], [1], [0, 0, 1, 1], [], []>} : vector<128x4xbf16>, vector<4x128xbf16>, vector<128x128xf32> -> vector<128x128xf32>
    %59 = arith.addf %53, %58 : vector<128x128xf32>
    %60 = arith.truncf %59 : vector<128x128xf32> to vector<128x128xbf16>
    %c0_33 = arith.constant 0 : index
    %c0_34 = arith.constant 0 : index
    %61 = vector.load %arg4[%c0_33, %c0_34] : memref<128x128xbf16, #tpu.memory_space<vmem>>, vector<128x128xbf16>
    tpu.vector_store %arg4[%c0_33, %c0_34], %60 {strides = array<i32>} : memref<128x128xbf16, #tpu.memory_space<vmem>>, vector<128x128xbf16>,
    %c0_35 = arith.constant 0 : index
    %c0_36 = arith.constant 0 : index
    %c0_37 = arith.constant 0 : index
    %62 = vector.load %arg5[%c0_35, %c0_36, %c0_37] : memref<1x1x128xf32, #tpu.memory_space<vmem>>, vector<1x1x128xf32>
    %63 = vector.shape_cast %62 : vector<1x1x128xf32> to vector<1x128xf32>
    %cst_38 = arith.constant dense<0.000000e+00> : vector<128xf32>
    %64 = vector.multi_reduction <add>, %59, %cst_38 [0] : vector<128x128xf32> to vector<128xf32>
    %65 = vector.shape_cast %64 : vector<128xf32> to vector<1x128xf32>
    %66 = arith.addf %63, %65 : vector<1x128xf32>
    %c0_39 = arith.constant 0 : index
    %c0_40 = arith.constant 0 : index
    %c0_41 = arith.constant 0 : index
    %67 = vector.load %arg5[%c0_39, %c0_40, %c0_41] : memref<1x1x128xf32, #tpu.memory_space<vmem>>, vector<1x1x128xf32>
    %68 = vector.shape_cast %67 : vector<1x1x128xf32> to vector<1x128xf32>
    %69 = vector.shape_cast %66 : vector<1x128xf32> to vector<1x1x128xf32>
    tpu.vector_store %arg5[%c0_39, %c0_40, %c0_41], %69 {strides = array<i32>} : memref<1x1x128xf32, #tpu.memory_space<vmem>>, vector<1x1x128xf32>,
    %c0_42 = arith.constant 0 : index
    %c0_43 = arith.constant 0 : index
    %c0_44 = arith.constant 0 : index
    %70 = vector.load %arg6[%c0_42, %c0_43, %c0_44] : memref<1x1x128xf32, #tpu.memory_space<vmem>>, vector<1x1x128xf32>
    %71 = vector.shape_cast %70 : vector<1x1x128xf32> to vector<1x128xf32>
    %72 = arith.mulf %59, %59 : vector<128x128xf32>
    %cst_45 = arith.constant dense<0.000000e+00> : vector<128xf32>
    %73 = vector.multi_reduction <add>, %72, %cst_45 [0] : vector<128x128xf32> to vector<128xf32>
    %74 = vector.shape_cast %73 : vector<128xf32> to vector<1x128xf32>
    %75 = arith.addf %71, %74 : vector<1x128xf32>
    %c0_46 = arith.constant 0 : index
    %c0_47 = arith.constant 0 : index
    %c0_48 = arith.constant 0 : index
    %76 = vector.load %arg6[%c0_46, %c0_47, %c0_48] : memref<1x1x128xf32, #tpu.memory_space<vmem>>, vector<1x1x128xf32>
    %77 = vector.shape_cast %76 : vector<1x1x128xf32> to vector<1x128xf32>
    %78 = vector.shape_cast %75 : vector<1x128xf32> to vector<1x1x128xf32>
    tpu.vector_store %arg6[%c0_46, %c0_47, %c0_48], %78 {strides = array<i32>} : memref<1x1x128xf32, #tpu.memory_space<vmem>>, vector<1x1x128xf32>,
    return
  }
  func.func @transform_0(%arg0: i32, %arg1: i32) -> (i32, i32, i32, i32, i32) {
    %c0_i32 = arith.constant 0 : i32
    %c0_i32_0 = arith.constant 0 : i32
    %c0_i32_1 = arith.constant 0 : i32
    %c0_i32_2 = arith.constant 0 : i32
    return %arg0, %arg1, %c0_i32, %c0_i32_0, %c0_i32_1 : i32, i32, i32, i32, i32
  }
  func.func @transform_1(%arg0: i32, %arg1: i32) -> (i32, i32, i32) {
    %c0_i32 = arith.constant 0 : i32
    %c0_i32_0 = arith.constant 0 : i32
    %c0_i32_1 = arith.constant 0 : i32
    %c0_i32_2 = arith.constant 0 : i32
    return %c0_i32, %c0_i32_0, %c0_i32_1 : i32, i32, i32
  }
  func.func @transform_2(%arg0: i32, %arg1: i32) -> (i32, i32) {
    %c2_i32 = arith.constant 2 : i32
    %0 = arith.muli %arg0, %c2_i32 : i32
    %1 = arith.addi %0, %arg1 : i32
    %c0_i32 = arith.constant 0 : i32
    %c0_i32_0 = arith.constant 0 : i32
    return %1, %c0_i32 : i32, i32
  }
  func.func @transform_3(%arg0: i32, %arg1: i32) -> (i32, i32, i32) {
    %c0_i32 = arith.constant 0 : i32
    %c0_i32_0 = arith.constant 0 : i32
    %c0_i32_1 = arith.constant 0 : i32
    return %arg0, %c0_i32, %c0_i32_0 : i32, i32, i32
  }
  func.func @transform_4(%arg0: i32, %arg1: i32) -> (i32, i32, i32) {
    %c0_i32 = arith.constant 0 : i32
    %c0_i32_0 = arith.constant 0 : i32
    %c0_i32_1 = arith.constant 0 : i32
    return %arg0, %c0_i32, %c0_i32_0 : i32, i32, i32
  }
}

</mosaic_0001>

<llo_original>
// kernel: tpu_custom_call.1
$region0: #{tpu_custom_call.1}
  #allocation0 [shape = 'u32[]', space=smem, size = 0x4, offset = 0x4, fixed_abs, tag = 'smem constant byte address 0x4 - core index']
  #allocation1 [shape = 'u32[72,128]{1,0:T(1,128)}', space=vmem, size = 0x9000, scoped, tag = 'internal scratch']
  %s0 = inlined_call_operand.vmem [shape: bf16[2,2,10,18,4], index: 0, kind: input, shape index: {}]
  %s1 = inlined_call_operand.vmem [shape: bf16[9,4,128], index: 1, kind: input, shape index: {}]
  %s2 = inlined_call_operand.hbm [shape: bf16[512,128], index: 2, kind: output, shape index: {0}]
  %s3 = inlined_call_operand.hbm [shape: f32[2,1,128], index: 3, kind: output, shape index: {1}]
  %s4 = inlined_call_operand.hbm [shape: f32[2,1,128], index: 4, kind: output, shape index: {2}]
  %5 = xla_tuple %s2, %s3, %s4
  %s6 = sld [smem:[#allocation0]]
  $region61: #{tpu_custom_call.1} parent=0
    _
  %s8 = ssub.s32 1, %s6
  %s9 = scalar_select 0, %s8, %s6
  $region1: #{tpu_custom_call.1} parent=0
    #allocation2 [shape = 'u8[65536]{0}', space=vmem, size = 0x10000, scoped, tag = 'output window, operand 0']
    #allocation3 [shape = 's32[2]{0}', space=sflag, size = 0x8, scoped, tag = 'scoped memory for tpu_custom_call.1']
    #allocation4 [shape = 'u8[1024]{0}', space=vmem, size = 0x400, scoped, tag = 'output window, operand 1']
    #allocation5 [shape = 's32[2]{0}', space=sflag, size = 0x8, scoped, tag = 'scoped memory for tpu_custom_call.1']
    #allocation6 [shape = 'u8[1024]{0}', space=vmem, size = 0x400, scoped, tag = 'output window, operand 2']
    %10 = vsyncpa [#allocation3], 0
    %s11 = scalar_lea.sflag [#allocation3], 1
    %12 = vsyncpa %s11, 0
    %13 = vsyncpa [#allocation5], 0
    %s14 = scalar_lea.sflag [#allocation5], 1
    %15 = vsyncpa %s14, 0
    loop: start=0, step=1, limit=6
    $region2: #{tpu_custom_call.1} parent=1 // loop_pre_header
      _
    $region3: #{tpu_custom_call.1} parent=1 // loop_header
      %s17 = sphi 0, %s21
      %p18 = scmp.ge.s32.totalorder %s17, 6
      %s24 = sphi 0, %s36
      %s25 = sphi 0, %s32
      %s26 = sphi 0, %s24
      %s27 = sphi 0, %s25
      %s28 = sphi 0, %s26
      %s29 = sphi 0, %s27
      %s41 = sphi 0, %s43
      %s44 = sphi 0, %s41
      %s45 = sphi 0, %s44
      %s61 = sphi 0, %s45
      %s65 = sphi 0, %s65
      %s67 = sphi 0, %s65
      %s68 = sphi 0, %s67
      %s82 = sphi 0, %s68
      %s92 = sphi 0, %s94
      %s95 = sphi 0, %s92
      %s96 = sphi 0, %s95
      %s112 = sphi 0, %s96
      %s118 = sphi 0, %s120
      %s121 = sphi 0, %s118
      %s122 = sphi 0, %s121
      %s138 = sphi 0, %s122
      %s144 = sphi 0, %s146
      %s147 = sphi 0, %s144
      %s148 = sphi 0, %s147
      %s164 = sphi 0, %s148
    $region4: #{tpu_custom_call.1} parent=1 // loop_header_branch
      %20 = sbr.rel (%p18) target = $region8
    $region5: #{tpu_custom_call.1} parent=1 // loop_body
      %s22 = ssub.s32 %s17, 1
      %s23 = ssub.s32 %s17, 2
      %s30 = sadd.s32 1, %s25
      %p31 = scmp.ge.s32.totalorder %s30, 2
      %s32 = scalar_select %p31, 0, %s30
      %s33 = sadd.s32 1, %s24
      %s34 = scalar_select %p31, %s33, %s24
      %p35 = scmp.ge.s32.totalorder %s34, 2
      %s36 = scalar_select %p35, 0, %s34
      %s37 = ssub.s32 %s24, %s36
      %s38 = ssub.s32 %s25, %s32
      %s39 = sor.u32 %s37, %s38
      %p40 = scmp.eq.s32.totalorder %s39, 0
      %s42 = sadd.s32 %s41, 1
      %s43 = scalar_select %p40, %s41, %s42
      %p46 = pneg %p40
      %p47 = scmp.eq.s32.totalorder %s17, 3
      %p48 = por %p46, %p47
      %p49 = scmp.ne.s32.totalorder %s41, %s44
      %p50 = scmp.eq.s32.totalorder %s17, 0
      %p51 = por %p49, %p50
      %p52 = scmp.ne.s32.totalorder %s41, %s44
      %p53 = scmp.eq.s32.totalorder %s22, 3
      %p54 = por %p52, %p53
      %p55 = scmp.ne.s32.totalorder %s44, %s45
      %p56 = scmp.eq.s32.totalorder %s22, 0
      %p57 = por %p55, %p56
      %p58 = scmp.ne.s32.totalorder %s44, %s45
      %p59 = scmp.eq.s32.totalorder %s23, 3
      %p60 = por %p58, %p59
      %p62 = scmp.ne.s32.totalorder %s45, %s61
      %p63 = scmp.eq.s32.totalorder %s23, 0
      %p64 = por %p62, %p63
      %s66 = sadd.s32 %s65, 1
      %p69 = scmp.eq.s32.totalorder %s17, 3
      %p70 = scmp.ne.s32.totalorder %s65, %s67
      %p71 = scmp.eq.s32.totalorder %s17, 0
      %p72 = por %p70, %p71
      %p73 = scmp.ne.s32.totalorder %s65, %s67
      %p74 = scmp.eq.s32.totalorder %s22, 3
      %p75 = por %p73, %p74
      %p76 = scmp.ne.s32.totalorder %s67, %s68
      %p77 = scmp.eq.s32.totalorder %s22, 0
      %p78 = por %p76, %p77
      %p79 = scmp.ne.s32.totalorder %s67, %s68
      %p80 = scmp.eq.s32.totalorder %s23, 3
      %p81 = por %p79, %p80
      %p83 = scmp.ne.s32.totalorder %s68, %s82
      %p84 = scmp.eq.s32.totalorder %s23, 0
      %p85 = por %p83, %p84
      %s86 = smul.u32 %s24, 2
      %s87 = sadd.s32 %s86, %s25
      %s88 = smul.u32 %s36, 2
      %s89 = sadd.s32 %s88, %s32
      %s90 = ssub.s32 %s87, %s89
      %p91 = scmp.eq.s32.totalorder %s90, 0
      %s93 = sadd.s32 %s92, 1
      %s94 = scalar_select %p91, %s92, %s93
      %p97 = pneg %p91
      %p98 = scmp.eq.s32.totalorder %s17, 3
      %p99 = por %p97, %p98
      %p100 = scmp.ne.s32.totalorder %s92, %s95
      %p101 = scmp.eq.s32.totalorder %s17, 0
      %p102 = por %p100, %p101
      %p103 = scmp.ne.s32.totalorder %s92, %s95
      %p104 = scmp.eq.s32.totalorder %s22, 3
      %p105 = por %p103, %p104
      %p106 = scmp.ne.s32.totalorder %s95, %s96
      %p107 = scmp.eq.s32.totalorder %s22, 0
      %p108 = por %p106, %p107
      %p109 = scmp.ne.s32.totalorder %s95, %s96
      %p110 = scmp.eq.s32.totalorder %s23, 3
      %p111 = por %p109, %p110
      %p113 = scmp.ne.s32.totalorder %s96, %s112
      %p114 = scmp.eq.s32.totalorder %s23, 0
      %p115 = por %p113, %p114
      %s116 = ssub.s32 %s24, %s36
      %p117 = scmp.eq.s32.totalorder %s116, 0
      %s119 = sadd.s32 %s118, 1
      %s120 = scalar_select %p117, %s118, %s119
      %p123 = pneg %p117
      %p124 = scmp.eq.s32.totalorder %s17, 3
      %p125 = por %p123, %p124
      %p126 = scmp.ne.s32.totalorder %s118, %s121
      %p127 = scmp.eq.s32.totalorder %s17, 0
      %p128 = por %p126, %p127
      %p129 = scmp.ne.s32.totalorder %s118, %s121
      %p130 = scmp.eq.s32.totalorder %s22, 3
      %p131 = por %p129, %p130
      %p132 = scmp.ne.s32.totalorder %s121, %s122
      %p133 = scmp.eq.s32.totalorder %s22, 0
      %p134 = por %p132, %p133
      %p135 = scmp.ne.s32.totalorder %s121, %s122
      %p136 = scmp.eq.s32.totalorder %s23, 3
      %p137 = por %p135, %p136
      %p139 = scmp.ne.s32.totalorder %s122, %s138
      %p140 = scmp.eq.s32.totalorder %s23, 0
      %p141 = por %p139, %p140
      %s142 = ssub.s32 %s24, %s36
      %p143 = scmp.eq.s32.totalorder %s142, 0
      %s145 = sadd.s32 %s144, 1
      %s146 = scalar_select %p143, %s144, %s145
      %p149 = pneg %p143
      %p150 = scmp.eq.s32.totalorder %s17, 3
      %p151 = por %p149, %p150
      %p152 = scmp.ne.s32.totalorder %s144, %s147
      %p153 = scmp.eq.s32.totalorder %s17, 0
      %p154 = por %p152, %p153
      %p155 = scmp.ne.s32.totalorder %s144, %s147
      %p156 = scmp.eq.s32.totalorder %s22, 3
      %p157 = por %p155, %p156
      %p158 = scmp.ne.s32.totalorder %s147, %s148
      %p159 = scmp.eq.s32.totalorder %s22, 0
      %p160 = por %p158, %p159
      %p161 = scmp.ne.s32.totalorder %s147, %s148
      %p162 = scmp.eq.s32.totalorder %s23, 3
      %p163 = por %p161, %p162
      %p165 = scmp.ne.s32.totalorder %s148, %s164
      %p166 = scmp.eq.s32.totalorder %s23, 0
      %p167 = por %p165, %p166
      %p168 = scmp.le.s32.totalorder 1, %s17
      %p169 = scmp.lt.s32.totalorder %s17, 5
      %p170 = pnand %p168, %p169
      %p171 = pneg %p170
      // Predicated region
      $region9: #{tpu_custom_call.1} parent=5 // pred_check
        _
      $region10: #{tpu_custom_call.1} parent=5 // pred_check_branch
        %173 = sbr.rel (%p170) target = $region12
      $region11: #{tpu_custom_call.1} parent=5 // pred_region
        %s174 = ssub.s32 %s17, 1
        // Predicated region
        $region13: #{tpu_custom_call.1} parent=11 // pred_check
          %p175 = pneg %p78
        $region14: #{tpu_custom_call.1} parent=11 // pred_check_branch
          %177 = sbr.rel (%p175) target = $region16
        $region15: #{tpu_custom_call.1} parent=11 // pred_region
          _
        $region16: #{tpu_custom_call.1} parent=11 // pred_fallthru
          _
      $region12: #{tpu_custom_call.1} parent=5 // pred_fallthru
        _
      %p178 = scmp.lt.s32.totalorder %s17, 4
      // Predicated region
      $region17: #{tpu_custom_call.1} parent=5 // pred_check
        %p179 = pneg %p178
      $region18: #{tpu_custom_call.1} parent=5 // pred_check_branch
        %181 = sbr.rel (%p179) target = $region20
      $region19: #{tpu_custom_call.1} parent=5 // pred_region
        // Predicated region
        $region21: #{tpu_custom_call.1} parent=19 // pred_check
          %p182 = pneg %p51
        $region22: #{tpu_custom_call.1} parent=19 // pred_check_branch
          %184 = sbr.rel (%p182) target = $region24
        $region23: #{tpu_custom_call.1} parent=19 // pred_region
          %p185 = scmp.lt.s32.totalorder %s24, 1
          %s186 = scalar_select %p185, %s24, 1
          %p187 = scmp.lt.s32.totalorder %s25, 1
          %s188 = scalar_select %p187, %s25, 1
          %s189 = smul.addr %s188, 30
          %s190 = smul.addr %s186, 60
          %s191 = sadd.s32 %s189, %s190
          %s192 = smul.addr %s191, 4
          %s193 = scalar_lea.vmem %s0, %s192
        $region24: #{tpu_custom_call.1} parent=19 // pred_fallthru
          _
      $region20: #{tpu_custom_call.1} parent=5 // pred_fallthru
        _
      %p194 = scmp.le.s32.totalorder 1, %s17
      %p195 = scmp.lt.s32.totalorder %s17, 5
      %p196 = pnand %p194, %p195
      %p197 = pneg %p196
      // Predicated region
      $region25: #{tpu_custom_call.1} parent=5 // pred_check
        _
      $region26: #{tpu_custom_call.1} parent=5 // pred_check_branch
        %199 = sbr.rel (%p196) target = $region28
      $region27: #{tpu_custom_call.1} parent=5 // pred_region
        %s200 = ssub.s32 %s17, 1
        %p201 = scmp.lt.s32.totalorder %s26, 1
        %s202 = scalar_select %p201, %s26, 1
        %p203 = scmp.lt.s32.totalorder %s27, 1
        %s204 = scalar_select %p203, %s27, 1
        %s205 = smul.addr %s204, 30
        %s206 = smul.addr %s202, 60
        %s207 = sadd.s32 %s205, %s206
        %s208 = smul.addr %s207, 4
        %s209 = scalar_lea.vmem %s0, %s208
        %p210 = pneg %p57
        %p211 = pneg %p54
        %p212 = pneg %p78
        %p213 = pneg %p75
        %p214 = pneg %p108
        %p215 = pneg %p105
        %s216 = sand.u32 %s95, 1
        %s217 = scalar_lea.sflag [#allocation3], %s216
        %s218 = sand.u32 %s95, 1
        %s219 = smul.addr %s218, 64
        %s220 = scalar_lea.vmem [#allocation2], %s219
        %p221 = pneg %p134
        %p222 = pneg %p131
        %s223 = sand.u32 %s22, 1
        %s224 = scalar_lea.sflag [#allocation5], %s223
        %s225 = sand.u32 %s121, 1
        %s226 = scalar_lea.vmem [#allocation4], %s225
        %p227 = pneg %p160
        %p228 = pneg %p157
        %s229 = sand.u32 %s22, 1
        %s230 = scalar_lea.sflag [#allocation5], %s229
        %s231 = sand.u32 %s147, 1
        %s232 = scalar_lea.vmem [#allocation6], %s231
        %p233 = scmp.lt.s32.totalorder %s26, 1
        %s234 = scalar_select %p233, %s26, 1
        %p235 = scmp.lt.s32.totalorder %s27, 1
        %s236 = scalar_select %p235, %s27, 1
        %s237 = smul.addr %s236, 30
        %s238 = smul.addr %s234, 60
        %s239 = sadd.s32 %s237, %s238
        %s240 = smul.addr %s239, 4
        %s241 = scalar_lea.vmem %s0, %s240
        %s242 = smul.u32 %s26, 2
        %s243 = sadd.s32 %s242, %s27
        %s244 = smul.u32 16, %s243
        %p246 = scmp.eq.s32.totalorder %s27, 0
        // Predicated region
        $region29: #{tpu_custom_call.1} parent=27 // pred_check
          %p247 = pneg %p246
        $region30: #{tpu_custom_call.1} parent=27 // pred_check_branch
          %249 = sbr.rel (%p247) target = $region32
        $region31: #{tpu_custom_call.1} parent=27 // pred_region
          %250 = vst [vmem:[%s226] sm:$0x1] 0.0
          %251 = vst [vmem:[%s232] sm:$0x1] 0.0
        $region32: #{tpu_custom_call.1} parent=27 // pred_fallthru
          _
        %v252 = vld [vmem:[%s241] sm:$0xf]
        %v253 = vld [vmem:[%s241 + $0x4] sm:$0xf]
        %v254 = vld [vmem:[%s241 + $0x8] sm:$0x1]
        %v255 = vld [vmem:[%s241 + $0xc] sm:$0xf]
        %v256 = vld [vmem:[%s241 + $0x10] sm:$0xf]
        %v257 = vld [vmem:[%s241 + $0x14] sm:$0x1]
        %v258 = vld [vmem:[%s241 + $0x18] sm:$0xf]
        %v259 = vld [vmem:[%s241 + $0x1c] sm:$0xf]
        %v260 = vld [vmem:[%s241 + $0x20] sm:$0x1]
        %v261 = vld [vmem:[%s241 + $0x24] sm:$0xf]
        %v262 = vld [vmem:[%s241 + $0x28] sm:$0xf]
        %v263 = vld [vmem:[%s241 + $0x2c] sm:$0x1]
        %v264 = vld [vmem:[%s241 + $0x30] sm:$0xf]
        %v265 = vld [vmem:[%s241 + $0x34] sm:$0xf]
        %v266 = vld [vmem:[%s241 + $0x38] sm:$0x1]
        %v267 = vld [vmem:[%s241 + $0x3c] sm:$0xf]
        %v268 = vld [vmem:[%s241 + $0x40] sm:$0xf]
        %v269 = vld [vmem:[%s241 + $0x44] sm:$0x1]
        %v270 = vld [vmem:[%s241 + $0x48] sm:$0xf]
        %v271 = vld [vmem:[%s241 + $0x4c] sm:$0xf]
        %v272 = vld [vmem:[%s241 + $0x50] sm:$0x1]
        %v273 = vld [vmem:[%s241 + $0x54] sm:$0xf]
        %v274 = vld [vmem:[%s241 + $0x58] sm:$0xf]
        %v275 = vld [vmem:[%s241 + $0x5c] sm:$0x1]
        %v276 = vld [vmem:[%s241 + $0x60] sm:$0xf]
        %v277 = vld [vmem:[%s241 + $0x64] sm:$0xf]
        %v278 = vld [vmem:[%s241 + $0x68] sm:$0x1]
        %v279 = vld [vmem:[%s241 + $0x6c] sm:$0xf]
        %v280 = vld [vmem:[%s241 + $0x70] sm:$0xf]
        %v281 = vld [vmem:[%s241 + $0x74] sm:$0x1]
        %v282 = vld [vmem:[%s1] sm:$0x3]
        %vm283 = vsmask.f32 3328
        %vm284 = vsmask.f32 7440
        %vm285 = vmor %vm283, %vm284
        %v287 = vshrl.u32 %v252, 16
        %v289 = vrot.slane %v287, 4
        %v290 = vshll.u32 %v252, 16
        %v292 = vrot.slane %v290, 5
        %v293 = vor.u32 %v289, %v292
        %v294 = vrot.slane %v293, 4
        %v296 = vshll.u32 %v253, 16
        %v298 = vrot.slane %v296, 5
        %v299 = vsel %vm285, %v294, %v298
        %v300 = vshrl.u32 %v253, 16
        %v302 = vrot.slane %v300, 4
        %v303 = vor.u32 %v302, %v298
        %v304 = vrot.slane %v303, 4
        %v306 = vshll.u32 %v254, 16
        %v308 = vrot.slane %v306, 5
        %v309 = vsel %vm285, %v304, %v308
        %v311 = vshrl.u32 %v255, 16
        %v313 = vrot.slane %v311, 4
        %v314 = vshll.u32 %v255, 16
        %v316 = vrot.slane %v314, 5
        %v317 = vor.u32 %v313, %v316
        %v318 = vrot.slane %v317, 4
        %v320 = vshll.u32 %v256, 16
        %v322 = vrot.slane %v320, 5
        %v323 = vsel %vm285, %v318, %v322
        %v324 = vshrl.u32 %v256, 16
        %v326 = vrot.slane %v324, 4
        %v327 = vor.u32 %v326, %v322
        %v328 = vrot.slane %v327, 4
        %v330 = vshll.u32 %v257, 16
        %v332 = vrot.slane %v330, 5
        %v333 = vsel %vm285, %v328, %v332
        %v335 = vshrl.u32 %v258, 16
        %v337 = vrot.slane %v335, 4
        %v338 = vshll.u32 %v258, 16
        %v340 = vrot.slane %v338, 5
        %v341 = vor.u32 %v337, %v340
        %v342 = vrot.slane %v341, 4
        %v344 = vshll.u32 %v259, 16
        %v346 = vrot.slane %v344, 5
        %v347 = vsel %vm285, %v342, %v346
        %v348 = vshrl.u32 %v259, 16
        %v350 = vrot.slane %v348, 4
        %v351 = vor.u32 %v350, %v346
        %v352 = vrot.slane %v351, 4
        %v354 = vshll.u32 %v260, 16
        %v356 = vrot.slane %v354, 5
        %v357 = vsel %vm285, %v352, %v356
        %v359 = vshrl.u32 %v261, 16
        %v361 = vrot.slane %v359, 4
        %v362 = vshll.u32 %v261, 16
        %v364 = vrot.slane %v362, 5
        %v365 = vor.u32 %v361, %v364
        %v366 = vrot.slane %v365, 4
        %v368 = vshll.u32 %v262, 16
        %v370 = vrot.slane %v368, 5
        %v371 = vsel %vm285, %v366, %v370
        %v372 = vshrl.u32 %v262, 16
        %v374 = vrot.slane %v372, 4
        %v375 = vor.u32 %v374, %v370
        %v376 = vrot.slane %v375, 4
        %v378 = vshll.u32 %v263, 16
        %v380 = vrot.slane %v378, 5
        %v381 = vsel %vm285, %v376, %v380
        %v383 = vshrl.u32 %v264, 16
        %v385 = vrot.slane %v383, 4
        %v386 = vshll.u32 %v264, 16
        %v388 = vrot.slane %v386, 5
        %v389 = vor.u32 %v385, %v388
        %v390 = vrot.slane %v389, 4
        %v392 = vshll.u32 %v265, 16
        %v394 = vrot.slane %v392, 5
        %v395 = vsel %vm285, %v390, %v394
        %v396 = vshrl.u32 %v265, 16
        %v398 = vrot.slane %v396, 4
        %v399 = vor.u32 %v398, %v394
        %v400 = vrot.slane %v399, 4
        %v402 = vshll.u32 %v266, 16
        %v404 = vrot.slane %v402, 5
        %v405 = vsel %vm285, %v400, %v404
        %v407 = vshrl.u32 %v267, 16
        %v409 = vrot.slane %v407, 4
        %v410 = vshll.u32 %v267, 16
        %v412 = vrot.slane %v410, 5
        %v413 = vor.u32 %v409, %v412
        %v414 = vrot.slane %v413, 4
        %v416 = vshll.u32 %v268, 16
        %v418 = vrot.slane %v416, 5
        %v419 = vsel %vm285, %v414, %v418
        %v420 = vshrl.u32 %v268, 16
        %v422 = vrot.slane %v420, 4
        %v423 = vor.u32 %v422, %v418
        %v424 = vrot.slane %v423, 4
        %v426 = vshll.u32 %v269, 16
        %v428 = vrot.slane %v426, 5
        %v429 = vsel %vm285, %v424, %v428
        %v431 = vshrl.u32 %v270, 16
        %v433 = vrot.slane %v431, 4
        %v434 = vshll.u32 %v270, 16
        %v436 = vrot.slane %v434, 5
        %v437 = vor.u32 %v433, %v436
        %v438 = vrot.slane %v437, 4
        %v440 = vshll.u32 %v271, 16
        %v442 = vrot.slane %v440, 5
        %v443 = vsel %vm285, %v438, %v442
        %v444 = vshrl.u32 %v271, 16
        %v446 = vrot.slane %v444, 4
        %v447 = vor.u32 %v446, %v442
        %v448 = vrot.slane %v447, 4
        %v450 = vshll.u32 %v272, 16
        %v452 = vrot.slane %v450, 5
        %v453 = vsel %vm285, %v448, %v452
        %v455 = vshrl.u32 %v273, 16
        %v457 = vrot.slane %v455, 4
        %v458 = vshll.u32 %v273, 16
        %v460 = vrot.slane %v458, 5
        %v461 = vor.u32 %v457, %v460
        %v462 = vrot.slane %v461, 4
        %v464 = vshll.u32 %v274, 16
        %v466 = vrot.slane %v464, 5
        %v467 = vsel %vm285, %v462, %v466
        %v468 = vshrl.u32 %v274, 16
        %v470 = vrot.slane %v468, 4
        %v471 = vor.u32 %v470, %v466
        %v472 = vrot.slane %v471, 4
        %v474 = vshll.u32 %v275, 16
        %v476 = vrot.slane %v474, 5
        %v477 = vsel %vm285, %v472, %v476
        %s478 = scalar_lea.vmem %s1, 2
        %v479 = vld [vmem:[%s478] sm:$0x3]
        %v480 = vunpack.c.l.b16 %v299
        %v481 = vunpack.c.l.b16 %v309
        %v482 = vunpack.c.l.b16 %v323
        %v483 = vunpack.c.l.b16 %v333
        %v484 = vunpack.c.l.b16 %v347
        %v485 = vunpack.c.l.b16 %v357
        %v486 = vunpack.c.l.b16 %v371
        %v487 = vunpack.c.l.b16 %v381
        %v488 = vunpack.c.l.b16 %v395
        %v489 = vunpack.c.l.b16 %v405
        %v490 = vunpack.c.l.b16 %v419
        %v491 = vunpack.c.l.b16 %v429
        %v492 = vunpack.c.l.b16 %v443
        %v493 = vunpack.c.l.b16 %v453
        %v494 = vunpack.c.l.b16 %v467
        %v495 = vunpack.c.l.b16 %v477
        %v496 = vpack.c.b16 %v481, %v480
        %v497 = vpack.c.b16 %v483, %v482
        %v498 = vpack.c.b16 %v485, %v484
        %v499 = vpack.c.b16 %v487, %v486
        %v500 = vpack.c.b16 %v489, %v488
        %v501 = vpack.c.b16 %v491, %v490
        %v502 = vpack.c.b16 %v493, %v492
        %v503 = vpack.c.b16 %v495, %v494
        %vm504 = vcmask 31744
        %v506 = vsel %vm504, %v496, 0
        %v509 = vsel %vm504, %v497, 0
        %v512 = vsel %vm504, %v498, 0
        %v515 = vsel %vm504, %v499, 0
        %v518 = vsel %vm504, %v500, 0
        %v521 = vsel %vm504, %v501, 0
        %v524 = vsel %vm504, %v502, 0
        %v527 = vsel %vm504, %v503, 0
        %vm529 = vcmask 1041408
        %v531 = vsel %vm529, %v479, 0
        %533 = vmatpush.bf16.msra.mxu0 0
        %534 = vmatpush.bf16.msra.mxu0 0
        %535 = vmatpush.bf16.msra.mxu0 0
        %536 = vmatpush.bf16.msra.mxu0 0
        %537 = vmatpush.bf16.msra.mxu0 0
        %538 = vmatpush.bf16.msra.mxu0 0
        %539 = vmatpush.bf16.msra.mxu0 0
        %540 = vmatpush.bf16.msra.mxu0 %v531
        %541 = vmatmul.bf16.gmra.mxu0 %v506
        %v542 = vpop.f32.mrf.mxu0
        %v543 = vadd.f32 0.0, %v542
        %v544 = vpop.f32.mrf.mxu0
        %v545 = vadd.f32 0.0, %v544
        %546 = vmatmul.bf16.gmra.mxu0 %v509
        %v547 = vpop.f32.mrf.mxu0
        %v548 = vadd.f32 0.0, %v547
        %v549 = vpop.f32.mrf.mxu0
        %v550 = vadd.f32 0.0, %v549
        %551 = vmatmul.bf16.gmra.mxu0 %v512
        %v552 = vpop.f32.mrf.mxu0
        %v553 = vadd.f32 0.0, %v552
        %v554 = vpop.f32.mrf.mxu0
        %v555 = vadd.f32 0.0, %v554
        %556 = vmatmul.bf16.gmra.mxu0 %v515
        %v557 = vpop.f32.mrf.mxu0
        %v558 = vadd.f32 0.0, %v557
        %v559 = vpop.f32.mrf.mxu0
        %v560 = vadd.f32 0.0, %v559
        %561 = vmatmul.bf16.gmra.mxu0 %v518
        %v562 = vpop.f32.mrf.mxu0
        %v563 = vadd.f32 0.0, %v562
        %v564 = vpop.f32.mrf.mxu0
        %v565 = vadd.f32 0.0, %v564
        %566 = vmatmul.bf16.gmra.mxu0 %v521
        %v567 = vpop.f32.mrf.mxu0
        %v568 = vadd.f32 0.0, %v567
        %v569 = vpop.f32.mrf.mxu0
        %v570 = vadd.f32 0.0, %v569
        %571 = vmatmul.bf16.gmra.mxu0 %v524
        %v572 = vpop.f32.mrf.mxu0
        %v573 = vadd.f32 0.0, %v572
        %v574 = vpop.f32.mrf.mxu0
        %v575 = vadd.f32 0.0, %v574
        %576 = vmatmul.bf16.gmra.mxu0 %v527
        %v577 = vpop.f32.mrf.mxu0
        %v578 = vadd.f32 0.0, %v577
        %v579 = vpop.f32.mrf.mxu0
        %v580 = vadd.f32 0.0, %v579
        %581 = vdwg.mxu0
        %v598 = vunpack.c.l.b16 %v252
        %v599 = vunpack.c.l.b16 %v253
        %v600 = vunpack.c.l.b16 %v255
        %v601 = vunpack.c.l.b16 %v256
        %v602 = vunpack.c.l.b16 %v258
        %v603 = vunpack.c.l.b16 %v259
        %v604 = vunpack.c.l.b16 %v261
        %v605 = vunpack.c.l.b16 %v262
        %v606 = vunpack.c.l.b16 %v264
        %v607 = vunpack.c.l.b16 %v265
        %v608 = vunpack.c.l.b16 %v267
        %v609 = vunpack.c.l.b16 %v268
        %v610 = vunpack.c.l.b16 %v270
        %v611 = vunpack.c.l.b16 %v271
        %v612 = vunpack.c.l.b16 %v273
        %v613 = vunpack.c.l.b16 %v274
        %v614 = vpack.c.b16 %v599, %v598
        %v615 = vpack.c.b16 %v601, %v600
        %v616 = vpack.c.b16 %v603, %v602
        %v617 = vpack.c.b16 %v605, %v604
        %v618 = vpack.c.b16 %v607, %v606
        %v619 = vpack.c.b16 %v609, %v608
        %v620 = vpack.c.b16 %v611, %v610
        %v621 = vpack.c.b16 %v613, %v612
        %v623 = vsel %vm504, %v614, 0
        %v626 = vsel %vm504, %v615, 0
        %v629 = vsel %vm504, %v616, 0
        %v632 = vsel %vm504, %v617, 0
        %v635 = vsel %vm504, %v618, 0
        %v638 = vsel %vm504, %v619, 0
        %v641 = vsel %vm504, %v620, 0
        %v644 = vsel %vm504, %v621, 0
        %v647 = vsel %vm529, %v282, 0
        %649 = vmatpush.bf16.msra.mxu0 0
        %650 = vmatpush.bf16.msra.mxu0 0
        %651 = vmatpush.bf16.msra.mxu0 0
        %652 = vmatpush.bf16.msra.mxu0 0
        %653 = vmatpush.bf16.msra.mxu0 0
        %654 = vmatpush.bf16.msra.mxu0 0
        %655 = vmatpush.bf16.msra.mxu0 0
        %656 = vmatpush.bf16.msra.mxu0 %v647
        %657 = vmatmul.bf16.gmra.mxu0 %v623
        %v658 = vpop.f32.mrf.mxu0
        %v659 = vadd.f32 %v543, %v658
        %v660 = vpop.f32.mrf.mxu0
        %v661 = vadd.f32 %v545, %v660
        %662 = vmatmul.bf16.gmra.mxu0 %v626
        %v663 = vpop.f32.mrf.mxu0
        %v664 = vadd.f32 %v548, %v663
        %v665 = vpop.f32.mrf.mxu0
        %v666 = vadd.f32 %v550, %v665
        %667 = vmatmul.bf16.gmra.mxu0 %v629
        %v668 = vpop.f32.mrf.mxu0
        %v669 = vadd.f32 %v553, %v668
        %v670 = vpop.f32.mrf.mxu0
        %v671 = vadd.f32 %v555, %v670
        %672 = vmatmul.bf16.gmra.mxu0 %v632
        %v673 = vpop.f32.mrf.mxu0
        %v674 = vadd.f32 %v558, %v673
        %v675 = vpop.f32.mrf.mxu0
        %v676 = vadd.f32 %v560, %v675
        %677 = vmatmul.bf16.gmra.mxu0 %v635
        %v678 = vpop.f32.mrf.mxu0
        %v679 = vadd.f32 %v563, %v678
        %v680 = vpop.f32.mrf.mxu0
        %v681 = vadd.f32 %v565, %v680
        %682 = vmatmul.bf16.gmra.mxu0 %v638
        %v683 = vpop.f32.mrf.mxu0
        %v684 = vadd.f32 %v568, %v683
        %v685 = vpop.f32.mrf.mxu0
        %v686 = vadd.f32 %v570, %v685
        %687 = vmatmul.bf16.gmra.mxu0 %v641
        %v688 = vpop.f32.mrf.mxu0
        %v689 = vadd.f32 %v573, %v688
        %v690 = vpop.f32.mrf.mxu0
        %v691 = vadd.f32 %v575, %v690
        %692 = vmatmul.bf16.gmra.mxu0 %v644
        %v693 = vpop.f32.mrf.mxu0
        %v694 = vadd.f32 %v578, %v693
        %v695 = vpop.f32.mrf.mxu0
        %v696 = vadd.f32 %v580, %v695
        %697 = vdwg.mxu0
        %vm706 = vcmask 1042432
        %vm707 = vcmask 1046532
        %vm708 = vmor %vm706, %vm707
        %v709 = vrot.slane %v252, 5
        %v710 = vrot.slane %v709, 4
        %v711 = vrot.slane %v253, 5
        %v712 = vsel %vm708, %v710, %v711
        %v713 = vrot.slane %v711, 4
        %v714 = vrot.slane %v254, 5
        %v715 = vsel %vm708, %v713, %v714
        %v716 = vrot.slane %v255, 5
        %v717 = vrot.slane %v716, 4
        %v718 = vrot.slane %v256, 5
        %v719 = vsel %vm708, %v717, %v718
        %v720 = vrot.slane %v718, 4
        %v721 = vrot.slane %v257, 5
        %v722 = vsel %vm708, %v720, %v721
        %v723 = vrot.slane %v258, 5
        %v724 = vrot.slane %v723, 4
        %v725 = vrot.slane %v259, 5
        %v726 = vsel %vm708, %v724, %v725
        %v727 = vrot.slane %v725, 4
        %v728 = vrot.slane %v260, 5
        %v729 = vsel %vm708, %v727, %v728
        %v730 = vrot.slane %v261, 5
        %v731 = vrot.slane %v730, 4
        %v732 = vrot.slane %v262, 5
        %v733 = vsel %vm708, %v731, %v732
        %v734 = vrot.slane %v732, 4
        %v735 = vrot.slane %v263, 5
        %v736 = vsel %vm708, %v734, %v735
        %v737 = vrot.slane %v264, 5
        %v738 = vrot.slane %v737, 4
        %v739 = vrot.slane %v265, 5
        %v740 = vsel %vm708, %v738, %v739
        %v741 = vrot.slane %v739, 4
        %v742 = vrot.slane %v266, 5
        %v743 = vsel %vm708, %v741, %v742
        %v744 = vrot.slane %v267, 5
        %v745 = vrot.slane %v744, 4
        %v746 = vrot.slane %v268, 5
        %v747 = vsel %vm708, %v745, %v746
        %v748 = vrot.slane %v746, 4
        %v749 = vrot.slane %v269, 5
        %v750 = vsel %vm708, %v748, %v749
        %v751 = vrot.slane %v270, 5
        %v752 = vrot.slane %v751, 4
        %v753 = vrot.slane %v271, 5
        %v754 = vsel %vm708, %v752, %v753
        %v755 = vrot.slane %v753, 4
        %v756 = vrot.slane %v272, 5
        %v757 = vsel %vm708, %v755, %v756
        %v758 = vrot.slane %v273, 5
        %v759 = vrot.slane %v758, 4
        %v760 = vrot.slane %v274, 5
        %v761 = vsel %vm708, %v759, %v760
        %v762 = vrot.slane %v760, 4
        %v763 = vrot.slane %v275, 5
        %v764 = vsel %vm708, %v762, %v763
        %s765 = scalar_lea.vmem %s1, 4
        %v766 = vld [vmem:[%s765] sm:$0x3]
        %v767 = vunpack.c.l.b16 %v712
        %v768 = vunpack.c.l.b16 %v715
        %v769 = vunpack.c.l.b16 %v719
        %v770 = vunpack.c.l.b16 %v722
        %v771 = vunpack.c.l.b16 %v726
        %v772 = vunpack.c.l.b16 %v729
        %v773 = vunpack.c.l.b16 %v733
        %v774 = vunpack.c.l.b16 %v736
        %v775 = vunpack.c.l.b16 %v740
        %v776 = vunpack.c.l.b16 %v743
        %v777 = vunpack.c.l.b16 %v747
        %v778 = vunpack.c.l.b16 %v750
        %v779 = vunpack.c.l.b16 %v754
        %v780 = vunpack.c.l.b16 %v757
        %v781 = vunpack.c.l.b16 %v761
        %v782 = vunpack.c.l.b16 %v764
        %v783 = vpack.c.b16 %v768, %v767
        %v784 = vpack.c.b16 %v770, %v769
        %v785 = vpack.c.b16 %v772, %v771
        %v786 = vpack.c.b16 %v774, %v773
        %v787 = vpack.c.b16 %v776, %v775
        %v788 = vpack.c.b16 %v778, %v777
        %v789 = vpack.c.b16 %v780, %v779
        %v790 = vpack.c.b16 %v782, %v781
        %v792 = vsel %vm504, %v783, 0
        %v795 = vsel %vm504, %v784, 0
        %v798 = vsel %vm504, %v785, 0
        %v801 = vsel %vm504, %v786, 0
        %v804 = vsel %vm504, %v787, 0
        %v807 = vsel %vm504, %v788, 0
        %v810 = vsel %vm504, %v789, 0
        %v813 = vsel %vm504, %v790, 0
        %v816 = vsel %vm529, %v766, 0
        %818 = vmatpush.bf16.msra.mxu0 0
        %819 = vmatpush.bf16.msra.mxu0 0
        %820 = vmatpush.bf16.msra.mxu0 0
        %821 = vmatpush.bf16.msra.mxu0 0
        %822 = vmatpush.bf16.msra.mxu0 0
        %823 = vmatpush.bf16.msra.mxu0 0
        %824 = vmatpush.bf16.msra.mxu0 0
        %825 = vmatpush.bf16.msra.mxu0 %v816
        %826 = vmatmul.bf16.gmra.mxu0 %v792
        %v827 = vpop.f32.mrf.mxu0
        %v828 = vadd.f32 0.0, %v827
        %v829 = vpop.f32.mrf.mxu0
        %v830 = vadd.f32 0.0, %v829
        %831 = vmatmul.bf16.gmra.mxu0 %v795
        %v832 = vpop.f32.mrf.mxu0
        %v833 = vadd.f32 0.0, %v832
        %v834 = vpop.f32.mrf.mxu0
        %v835 = vadd.f32 0.0, %v834
        %836 = vmatmul.bf16.gmra.mxu0 %v798
        %v837 = vpop.f32.mrf.mxu0
        %v838 = vadd.f32 0.0, %v837
        %v839 = vpop.f32.mrf.mxu0
        %v840 = vadd.f32 0.0, %v839
        %841 = vmatmul.bf16.gmra.mxu0 %v801
        %v842 = vpop.f32.mrf.mxu0
        %v843 = vadd.f32 0.0, %v842
        %v844 = vpop.f32.mrf.mxu0
        %v845 = vadd.f32 0.0, %v844
        %846 = vmatmul.bf16.gmra.mxu0 %v804
        %v847 = vpop.f32.mrf.mxu0
        %v848 = vadd.f32 0.0, %v847
        %v849 = vpop.f32.mrf.mxu0
        %v850 = vadd.f32 0.0, %v849
        %851 = vmatmul.bf16.gmra.mxu0 %v807
        %v852 = vpop.f32.mrf.mxu0
        %v853 = vadd.f32 0.0, %v852
        %v854 = vpop.f32.mrf.mxu0
        %v855 = vadd.f32 0.0, %v854
        %856 = vmatmul.bf16.gmra.mxu0 %v810
        %v857 = vpop.f32.mrf.mxu0
        %v858 = vadd.f32 0.0, %v857
        %v859 = vpop.f32.mrf.mxu0
        %v860 = vadd.f32 0.0, %v859
        %861 = vmatmul.bf16.gmra.mxu0 %v813
        %v862 = vpop.f32.mrf.mxu0
        %v863 = vadd.f32 0.0, %v862
        %v864 = vpop.f32.mrf.mxu0
        %v865 = vadd.f32 0.0, %v864
        %866 = vdwg.mxu0
        %v867 = vadd.f32 %v659, %v828
        %v868 = vadd.f32 %v661, %v830
        %v869 = vadd.f32 %v664, %v833
        %v870 = vadd.f32 %v666, %v835
        %v871 = vadd.f32 %v669, %v838
        %v872 = vadd.f32 %v671, %v840
        %v873 = vadd.f32 %v674, %v843
        %v874 = vadd.f32 %v676, %v845
        %v875 = vadd.f32 %v679, %v848
        %v876 = vadd.f32 %v681, %v850
        %v877 = vadd.f32 %v684, %v853
        %v878 = vadd.f32 %v686, %v855
        %v879 = vadd.f32 %v689, %v858
        %v880 = vadd.f32 %v691, %v860
        %v881 = vadd.f32 %v694, %v863
        %v882 = vadd.f32 %v696, %v865
        %s883 = scalar_lea.vmem %s1, 6
        %v884 = vld [vmem:[%s883] sm:$0x3]
        %v887 = vunpack.c.l.b16 %v276
        %v888 = vunpack.c.l.b16 %v277
        %v889 = vpack.c.b16 %v888, %v887
        %v891 = vsel %vm504, %v889, 0
        %v894 = vsel %vm529, %v884, 0
        %896 = vmatpush.bf16.msra.mxu0 0
        %897 = vmatpush.bf16.msra.mxu0 0
        %898 = vmatpush.bf16.msra.mxu0 0
        %899 = vmatpush.bf16.msra.mxu0 0
        %900 = vmatpush.bf16.msra.mxu0 0
        %901 = vmatpush.bf16.msra.mxu0 0
        %902 = vmatpush.bf16.msra.mxu0 0
        %903 = vmatpush.bf16.msra.mxu0 %v894
        %904 = vmatmul.bf16.gmra.mxu0 %v626
        %v905 = vpop.f32.mrf.mxu0
        %v906 = vadd.f32 0.0, %v905
        %v907 = vpop.f32.mrf.mxu0
        %v908 = vadd.f32 0.0, %v907
        %909 = vmatmul.bf16.gmra.mxu0 %v629
        %v910 = vpop.f32.mrf.mxu0
        %v911 = vadd.f32 0.0, %v910
        %v912 = vpop.f32.mrf.mxu0
        %v913 = vadd.f32 0.0, %v912
        %914 = vmatmul.bf16.gmra.mxu0 %v632
        %v915 = vpop.f32.mrf.mxu0
        %v916 = vadd.f32 0.0, %v915
        %v917 = vpop.f32.mrf.mxu0
        %v918 = vadd.f32 0.0, %v917
        %919 = vmatmul.bf16.gmra.mxu0 %v635
        %v920 = vpop.f32.mrf.mxu0
        %v921 = vadd.f32 0.0, %v920
        %v922 = vpop.f32.mrf.mxu0
        %v923 = vadd.f32 0.0, %v922
        %924 = vmatmul.bf16.gmra.mxu0 %v638
        %v925 = vpop.f32.mrf.mxu0
        %v926 = vadd.f32 0.0, %v925
        %v927 = vpop.f32.mrf.mxu0
        %v928 = vadd.f32 0.0, %v927
        %929 = vmatmul.bf16.gmra.mxu0 %v641
        %v930 = vpop.f32.mrf.mxu0
        %v931 = vadd.f32 0.0, %v930
        %v932 = vpop.f32.mrf.mxu0
        %v933 = vadd.f32 0.0, %v932
        %934 = vmatmul.bf16.gmra.mxu0 %v644
        %v935 = vpop.f32.mrf.mxu0
        %v936 = vadd.f32 0.0, %v935
        %v937 = vpop.f32.mrf.mxu0
        %v938 = vadd.f32 0.0, %v937
        %939 = vmatmul.bf16.gmra.mxu0 %v891
        %v940 = vpop.f32.mrf.mxu0
        %v941 = vadd.f32 0.0, %v940
        %v942 = vpop.f32.mrf.mxu0
        %v943 = vadd.f32 0.0, %v942
        %944 = vdwg.mxu0
        %v945 = vadd.f32 %v867, %v906
        %v946 = vadd.f32 %v868, %v908
        %v947 = vadd.f32 %v869, %v911
        %v948 = vadd.f32 %v870, %v913
        %v949 = vadd.f32 %v871, %v916
        %v950 = vadd.f32 %v872, %v918
        %v951 = vadd.f32 %v873, %v921
        %v952 = vadd.f32 %v874, %v923
        %v953 = vadd.f32 %v875, %v926
        %v954 = vadd.f32 %v876, %v928
        %v955 = vadd.f32 %v877, %v931
        %v956 = vadd.f32 %v878, %v933
        %v957 = vadd.f32 %v879, %v936
        %v958 = vadd.f32 %v880, %v938
        %v959 = vadd.f32 %v881, %v941
        %v960 = vadd.f32 %v882, %v943
        %v962 = vshrl.u32 %v276, 16
        %v964 = vrot.slane %v962, 4
        %v965 = vshll.u32 %v276, 16
        %v967 = vrot.slane %v965, 5
        %v968 = vor.u32 %v964, %v967
        %v969 = vrot.slane %v968, 4
        %v971 = vshll.u32 %v277, 16
        %v973 = vrot.slane %v971, 5
        %v974 = vsel %vm285, %v969, %v973
        %v975 = vshrl.u32 %v277, 16
        %v977 = vrot.slane %v975, 4
        %v978 = vor.u32 %v977, %v973
        %v979 = vrot.slane %v978, 4
        %v981 = vshll.u32 %v278, 16
        %v983 = vrot.slane %v981, 5
        %v984 = vsel %vm285, %v979, %v983
        %s985 = scalar_lea.vmem %s1, 8
        %v986 = vld [vmem:[%s985] sm:$0x3]
        %v987 = vunpack.c.l.b16 %v974
        %v988 = vunpack.c.l.b16 %v984
        %v989 = vpack.c.b16 %v988, %v987
        %v991 = vsel %vm504, %v989, 0
        %v994 = vsel %vm529, %v986, 0
        %996 = vmatpush.bf16.msra.mxu0 0
        %997 = vmatpush.bf16.msra.mxu0 0
        %998 = vmatpush.bf16.msra.mxu0 0
        %999 = vmatpush.bf16.msra.mxu0 0
        %1000 = vmatpush.bf16.msra.mxu0 0
        %1001 = vmatpush.bf16.msra.mxu0 0
        %1002 = vmatpush.bf16.msra.mxu0 0
        %1003 = vmatpush.bf16.msra.mxu0 %v994
        %1004 = vmatmul.bf16.gmra.mxu0 %v509
        %v1005 = vpop.f32.mrf.mxu0
        %v1006 = vadd.f32 0.0, %v1005
        %v1007 = vpop.f32.mrf.mxu0
        %v1008 = vadd.f32 0.0, %v1007
        %1009 = vmatmul.bf16.gmra.mxu0 %v512
        %v1010 = vpop.f32.mrf.mxu0
        %v1011 = vadd.f32 0.0, %v1010
        %v1012 = vpop.f32.mrf.mxu0
        %v1013 = vadd.f32 0.0, %v1012
        %1014 = vmatmul.bf16.gmra.mxu0 %v515
        %v1015 = vpop.f32.mrf.mxu0
        %v1016 = vadd.f32 0.0, %v1015
        %v1017 = vpop.f32.mrf.mxu0
        %v1018 = vadd.f32 0.0, %v1017
        %1019 = vmatmul.bf16.gmra.mxu0 %v518
        %v1020 = vpop.f32.mrf.mxu0
        %v1021 = vadd.f32 0.0, %v1020
        %v1022 = vpop.f32.mrf.mxu0
        %v1023 = vadd.f32 0.0, %v1022
        %1024 = vmatmul.bf16.gmra.mxu0 %v521
        %v1025 = vpop.f32.mrf.mxu0
        %v1026 = vadd.f32 0.0, %v1025
        %v1027 = vpop.f32.mrf.mxu0
        %v1028 = vadd.f32 0.0, %v1027
        %1029 = vmatmul.bf16.gmra.mxu0 %v524
        %v1030 = vpop.f32.mrf.mxu0
        %v1031 = vadd.f32 0.0, %v1030
        %v1032 = vpop.f32.mrf.mxu0
        %v1033 = vadd.f32 0.0, %v1032
        %1034 = vmatmul.bf16.gmra.mxu0 %v527
        %v1035 = vpop.f32.mrf.mxu0
        %v1036 = vadd.f32 0.0, %v1035
        %v1037 = vpop.f32.mrf.mxu0
        %v1038 = vadd.f32 0.0, %v1037
        %1039 = vmatmul.bf16.gmra.mxu0 %v991
        %v1040 = vpop.f32.mrf.mxu0
        %v1041 = vadd.f32 0.0, %v1040
        %v1042 = vpop.f32.mrf.mxu0
        %v1043 = vadd.f32 0.0, %v1042
        %1044 = vdwg.mxu0
        %v1045 = vadd.f32 %v945, %v1006
        %v1046 = vadd.f32 %v946, %v1008
        %v1047 = vadd.f32 %v947, %v1011
        %v1048 = vadd.f32 %v948, %v1013
        %v1049 = vadd.f32 %v949, %v1016
        %v1050 = vadd.f32 %v950, %v1018
        %v1051 = vadd.f32 %v951, %v1021
        %v1052 = vadd.f32 %v952, %v1023
        %v1053 = vadd.f32 %v953, %v1026
        %v1054 = vadd.f32 %v954, %v1028
        %v1055 = vadd.f32 %v955, %v1031
        %v1056 = vadd.f32 %v956, %v1033
        %v1057 = vadd.f32 %v957, %v1036
        %v1058 = vadd.f32 %v958, %v1038
        %v1059 = vadd.f32 %v959, %v1041
        %v1060 = vadd.f32 %v960, %v1043
        %v1062 = vrot.slane %v276, 5
        %v1063 = vrot.slane %v1062, 4
        %v1064 = vrot.slane %v277, 5
        %v1065 = vsel %vm708, %v1063, %v1064
        %v1066 = vrot.slane %v1064, 4
        %v1067 = vrot.slane %v278, 5
        %v1068 = vsel %vm708, %v1066, %v1067
        %s1069 = scalar_lea.vmem %s1, 10
        %v1070 = vld [vmem:[%s1069] sm:$0x3]
        %v1071 = vunpack.c.l.b16 %v1065
        %v1072 = vunpack.c.l.b16 %v1068
        %v1073 = vpack.c.b16 %v1072, %v1071
        %v1075 = vsel %vm504, %v1073, 0
        %v1078 = vsel %vm529, %v1070, 0
        %1080 = vmatpush.bf16.msra.mxu0 0
        %1081 = vmatpush.bf16.msra.mxu0 0
        %1082 = vmatpush.bf16.msra.mxu0 0
        %1083 = vmatpush.bf16.msra.mxu0 0
        %1084 = vmatpush.bf16.msra.mxu0 0
        %1085 = vmatpush.bf16.msra.mxu0 0
        %1086 = vmatpush.bf16.msra.mxu0 0
        %1087 = vmatpush.bf16.msra.mxu0 %v1078
        %1088 = vmatmul.bf16.gmra.mxu0 %v795
        %v1089 = vpop.f32.mrf.mxu0
        %v1090 = vadd.f32 0.0, %v1089
        %v1091 = vpop.f32.mrf.mxu0
        %v1092 = vadd.f32 0.0, %v1091
        %1093 = vmatmul.bf16.gmra.mxu0 %v798
        %v1094 = vpop.f32.mrf.mxu0
        %v1095 = vadd.f32 0.0, %v1094
        %v1096 = vpop.f32.mrf.mxu0
        %v1097 = vadd.f32 0.0, %v1096
        %1098 = vmatmul.bf16.gmra.mxu0 %v801
        %v1099 = vpop.f32.mrf.mxu0
        %v1100 = vadd.f32 0.0, %v1099
        %v1101 = vpop.f32.mrf.mxu0
        %v1102 = vadd.f32 0.0, %v1101
        %1103 = vmatmul.bf16.gmra.mxu0 %v804
        %v1104 = vpop.f32.mrf.mxu0
        %v1105 = vadd.f32 0.0, %v1104
        %v1106 = vpop.f32.mrf.mxu0
        %v1107 = vadd.f32 0.0, %v1106
        %1108 = vmatmul.bf16.gmra.mxu0 %v807
        %v1109 = vpop.f32.mrf.mxu0
        %v1110 = vadd.f32 0.0, %v1109
        %v1111 = vpop.f32.mrf.mxu0
        %v1112 = vadd.f32 0.0, %v1111
        %1113 = vmatmul.bf16.gmra.mxu0 %v810
        %v1114 = vpop.f32.mrf.mxu0
        %v1115 = vadd.f32 0.0, %v1114
        %v1116 = vpop.f32.mrf.mxu0
        %v1117 = vadd.f32 0.0, %v1116
        %1118 = vmatmul.bf16.gmra.mxu0 %v813
        %v1119 = vpop.f32.mrf.mxu0
        %v1120 = vadd.f32 0.0, %v1119
        %v1121 = vpop.f32.mrf.mxu0
        %v1122 = vadd.f32 0.0, %v1121
        %1123 = vmatmul.bf16.gmra.mxu0 %v1075
        %v1124 = vpop.f32.mrf.mxu0
        %v1125 = vadd.f32 0.0, %v1124
        %v1126 = vpop.f32.mrf.mxu0
        %v1127 = vadd.f32 0.0, %v1126
        %1128 = vdwg.mxu0
        %v1129 = vadd.f32 %v1045, %v1090
        %v1130 = vadd.f32 %v1046, %v1092
        %v1131 = vadd.f32 %v1047, %v1095
        %v1132 = vadd.f32 %v1048, %v1097
        %v1133 = vadd.f32 %v1049, %v1100
        %v1134 = vadd.f32 %v1050, %v1102
        %v1135 = vadd.f32 %v1051, %v1105
        %v1136 = vadd.f32 %v1052, %v1107
        %v1137 = vadd.f32 %v1053, %v1110
        %v1138 = vadd.f32 %v1054, %v1112
        %v1139 = vadd.f32 %v1055, %v1115
        %v1140 = vadd.f32 %v1056, %v1117
        %v1141 = vadd.f32 %v1057, %v1120
        %v1142 = vadd.f32 %v1058, %v1122
        %v1143 = vadd.f32 %v1059, %v1125
        %v1144 = vadd.f32 %v1060, %v1127
        %s1145 = scalar_lea.vmem %s1, 12
        %v1146 = vld [vmem:[%s1145] sm:$0x3]
        %v1149 = vunpack.c.l.b16 %v279
        %v1150 = vunpack.c.l.b16 %v280
        %v1151 = vpack.c.b16 %v1150, %v1149
        %v1153 = vsel %vm504, %v1151, 0
        %v1156 = vsel %vm529, %v1146, 0
        %1158 = vmatpush.bf16.msra.mxu0 0
        %1159 = vmatpush.bf16.msra.mxu0 0
        %1160 = vmatpush.bf16.msra.mxu0 0
        %1161 = vmatpush.bf16.msra.mxu0 0
        %1162 = vmatpush.bf16.msra.mxu0 0
        %1163 = vmatpush.bf16.msra.mxu0 0
        %1164 = vmatpush.bf16.msra.mxu0 0
        %1165 = vmatpush.bf16.msra.mxu0 %v1156
        %1166 = vmatmul.bf16.gmra.mxu0 %v629
        %v1167 = vpop.f32.mrf.mxu0
        %v1168 = vadd.f32 0.0, %v1167
        %v1169 = vpop.f32.mrf.mxu0
        %v1170 = vadd.f32 0.0, %v1169
        %1171 = vmatmul.bf16.gmra.mxu0 %v632
        %v1172 = vpop.f32.mrf.mxu0
        %v1173 = vadd.f32 0.0, %v1172
        %v1174 = vpop.f32.mrf.mxu0
        %v1175 = vadd.f32 0.0, %v1174
        %1176 = vmatmul.bf16.gmra.mxu0 %v635
        %v1177 = vpop.f32.mrf.mxu0
        %v1178 = vadd.f32 0.0, %v1177
        %v1179 = vpop.f32.mrf.mxu0
        %v1180 = vadd.f32 0.0, %v1179
        %1181 = vmatmul.bf16.gmra.mxu0 %v638
        %v1182 = vpop.f32.mrf.mxu0
        %v1183 = vadd.f32 0.0, %v1182
        %v1184 = vpop.f32.mrf.mxu0
        %v1185 = vadd.f32 0.0, %v1184
        %1186 = vmatmul.bf16.gmra.mxu0 %v641
        %v1187 = vpop.f32.mrf.mxu0
        %v1188 = vadd.f32 0.0, %v1187
        %v1189 = vpop.f32.mrf.mxu0
        %v1190 = vadd.f32 0.0, %v1189
        %1191 = vmatmul.bf16.gmra.mxu0 %v644
        %v1192 = vpop.f32.mrf.mxu0
        %v1193 = vadd.f32 0.0, %v1192
        %v1194 = vpop.f32.mrf.mxu0
        %v1195 = vadd.f32 0.0, %v1194
        %1196 = vmatmul.bf16.gmra.mxu0 %v891
        %v1197 = vpop.f32.mrf.mxu0
        %v1198 = vadd.f32 0.0, %v1197
        %v1199 = vpop.f32.mrf.mxu0
        %v1200 = vadd.f32 0.0, %v1199
        %1201 = vmatmul.bf16.gmra.mxu0 %v1153
        %v1202 = vpop.f32.mrf.mxu0
        %v1203 = vadd.f32 0.0, %v1202
        %v1204 = vpop.f32.mrf.mxu0
        %v1205 = vadd.f32 0.0, %v1204
        %1206 = vdwg.mxu0
        %v1207 = vadd.f32 %v1129, %v1168
        %v1208 = vadd.f32 %v1130, %v1170
        %v1209 = vadd.f32 %v1131, %v1173
        %v1210 = vadd.f32 %v1132, %v1175
        %v1211 = vadd.f32 %v1133, %v1178
        %v1212 = vadd.f32 %v1134, %v1180
        %v1213 = vadd.f32 %v1135, %v1183
        %v1214 = vadd.f32 %v1136, %v1185
        %v1215 = vadd.f32 %v1137, %v1188
        %v1216 = vadd.f32 %v1138, %v1190
        %v1217 = vadd.f32 %v1139, %v1193
        %v1218 = vadd.f32 %v1140, %v1195
        %v1219 = vadd.f32 %v1141, %v1198
        %v1220 = vadd.f32 %v1142, %v1200
        %v1221 = vadd.f32 %v1143, %v1203
        %v1222 = vadd.f32 %v1144, %v1205
        %v1224 = vshrl.u32 %v279, 16
        %v1226 = vrot.slane %v1224, 4
        %v1227 = vshll.u32 %v279, 16
        %v1229 = vrot.slane %v1227, 5
        %v1230 = vor.u32 %v1226, %v1229
        %v1231 = vrot.slane %v1230, 4
        %v1233 = vshll.u32 %v280, 16
        %v1235 = vrot.slane %v1233, 5
        %v1236 = vsel %vm285, %v1231, %v1235
        %v1237 = vshrl.u32 %v280, 16
        %v1239 = vrot.slane %v1237, 4
        %v1240 = vor.u32 %v1239, %v1235
        %v1241 = vrot.slane %v1240, 4
        %v1243 = vshll.u32 %v281, 16
        %v1245 = vrot.slane %v1243, 5
        %v1246 = vsel %vm285, %v1241, %v1245
        %s1247 = scalar_lea.vmem %s1, 14
        %v1248 = vld [vmem:[%s1247] sm:$0x3]
        %v1249 = vunpack.c.l.b16 %v1236
        %v1250 = vunpack.c.l.b16 %v1246
        %v1251 = vpack.c.b16 %v1250, %v1249
        %v1253 = vsel %vm504, %v1251, 0
        %v1256 = vsel %vm529, %v1248, 0
        %1258 = vmatpush.bf16.msra.mxu0 0
        %1259 = vmatpush.bf16.msra.mxu0 0
        %1260 = vmatpush.bf16.msra.mxu0 0
        %1261 = vmatpush.bf16.msra.mxu0 0
        %1262 = vmatpush.bf16.msra.mxu0 0
        %1263 = vmatpush.bf16.msra.mxu0 0
        %1264 = vmatpush.bf16.msra.mxu0 0
        %1265 = vmatpush.bf16.msra.mxu0 %v1256
        %1266 = vmatmul.bf16.gmra.mxu0 %v512
        %v1267 = vpop.f32.mrf.mxu0
        %v1268 = vadd.f32 0.0, %v1267
        %v1269 = vpop.f32.mrf.mxu0
        %v1270 = vadd.f32 0.0, %v1269
        %1271 = vmatmul.bf16.gmra.mxu0 %v515
        %v1272 = vpop.f32.mrf.mxu0
        %v1273 = vadd.f32 0.0, %v1272
        %v1274 = vpop.f32.mrf.mxu0
        %v1275 = vadd.f32 0.0, %v1274
        %1276 = vmatmul.bf16.gmra.mxu0 %v518
        %v1277 = vpop.f32.mrf.mxu0
        %v1278 = vadd.f32 0.0, %v1277
        %v1279 = vpop.f32.mrf.mxu0
        %v1280 = vadd.f32 0.0, %v1279
        %1281 = vmatmul.bf16.gmra.mxu0 %v521
        %v1282 = vpop.f32.mrf.mxu0
        %v1283 = vadd.f32 0.0, %v1282
        %v1284 = vpop.f32.mrf.mxu0
        %v1285 = vadd.f32 0.0, %v1284
        %1286 = vmatmul.bf16.gmra.mxu0 %v524
        %v1287 = vpop.f32.mrf.mxu0
        %v1288 = vadd.f32 0.0, %v1287
        %v1289 = vpop.f32.mrf.mxu0
        %v1290 = vadd.f32 0.0, %v1289
        %1291 = vmatmul.bf16.gmra.mxu0 %v527
        %v1292 = vpop.f32.mrf.mxu0
        %v1293 = vadd.f32 0.0, %v1292
        %v1294 = vpop.f32.mrf.mxu0
        %v1295 = vadd.f32 0.0, %v1294
        %1296 = vmatmul.bf16.gmra.mxu0 %v991
        %v1297 = vpop.f32.mrf.mxu0
        %v1298 = vadd.f32 0.0, %v1297
        %v1299 = vpop.f32.mrf.mxu0
        %v1300 = vadd.f32 0.0, %v1299
        %1301 = vmatmul.bf16.gmra.mxu0 %v1253
        %v1302 = vpop.f32.mrf.mxu0
        %v1303 = vadd.f32 0.0, %v1302
        %v1304 = vpop.f32.mrf.mxu0
        %v1305 = vadd.f32 0.0, %v1304
        %1306 = vdwg.mxu0
        %v1307 = vadd.f32 %v1207, %v1268
        %v1308 = vadd.f32 %v1208, %v1270
        %v1309 = vadd.f32 %v1209, %v1273
        %v1310 = vadd.f32 %v1210, %v1275
        %v1311 = vadd.f32 %v1211, %v1278
        %v1312 = vadd.f32 %v1212, %v1280
        %v1313 = vadd.f32 %v1213, %v1283
        %v1314 = vadd.f32 %v1214, %v1285
        %v1315 = vadd.f32 %v1215, %v1288
        %v1316 = vadd.f32 %v1216, %v1290
        %v1317 = vadd.f32 %v1217, %v1293
        %v1318 = vadd.f32 %v1218, %v1295
        %v1319 = vadd.f32 %v1219, %v1298
        %v1320 = vadd.f32 %v1220, %v1300
        %v1321 = vadd.f32 %v1221, %v1303
        %v1322 = vadd.f32 %v1222, %v1305
        %v1324 = vrot.slane %v279, 5
        %v1325 = vrot.slane %v1324, 4
        %v1326 = vrot.slane %v280, 5
        %v1327 = vsel %vm708, %v1325, %v1326
        %v1328 = vrot.slane %v1326, 4
        %v1329 = vrot.slane %v281, 5
        %v1330 = vsel %vm708, %v1328, %v1329
        %s1331 = scalar_lea.vmem %s1, 16
        %v1332 = vld [vmem:[%s1331] sm:$0x3]
        %v1333 = vunpack.c.l.b16 %v1327
        %v1334 = vunpack.c.l.b16 %v1330
        %v1335 = vpack.c.b16 %v1334, %v1333
        %v1337 = vsel %vm504, %v1335, 0
        %v1340 = vsel %vm529, %v1332, 0
        %1342 = vmatpush.bf16.msra.mxu0 0
        %1343 = vmatpush.bf16.msra.mxu0 0
        %1344 = vmatpush.bf16.msra.mxu0 0
        %1345 = vmatpush.bf16.msra.mxu0 0
        %1346 = vmatpush.bf16.msra.mxu0 0
        %1347 = vmatpush.bf16.msra.mxu0 0
        %1348 = vmatpush.bf16.msra.mxu0 0
        %1349 = vmatpush.bf16.msra.mxu0 %v1340
        %1350 = vmatmul.bf16.gmra.mxu0 %v798
        %v1351 = vpop.f32.mrf.mxu0
        %v1352 = vadd.f32 0.0, %v1351
        %v1353 = vpop.f32.mrf.mxu0
        %v1354 = vadd.f32 0.0, %v1353
        %1355 = vmatmul.bf16.gmra.mxu0 %v801
        %v1356 = vpop.f32.mrf.mxu0
        %v1357 = vadd.f32 0.0, %v1356
        %v1358 = vpop.f32.mrf.mxu0
        %v1359 = vadd.f32 0.0, %v1358
        %1360 = vmatmul.bf16.gmra.mxu0 %v804
        %v1361 = vpop.f32.mrf.mxu0
        %v1362 = vadd.f32 0.0, %v1361
        %v1363 = vpop.f32.mrf.mxu0
        %v1364 = vadd.f32 0.0, %v1363
        %1365 = vmatmul.bf16.gmra.mxu0 %v807
        %v1366 = vpop.f32.mrf.mxu0
        %v1367 = vadd.f32 0.0, %v1366
        %v1368 = vpop.f32.mrf.mxu0
        %v1369 = vadd.f32 0.0, %v1368
        %1370 = vmatmul.bf16.gmra.mxu0 %v810
        %v1371 = vpop.f32.mrf.mxu0
        %v1372 = vadd.f32 0.0, %v1371
        %v1373 = vpop.f32.mrf.mxu0
        %v1374 = vadd.f32 0.0, %v1373
        %1375 = vmatmul.bf16.gmra.mxu0 %v813
        %v1376 = vpop.f32.mrf.mxu0
        %v1377 = vadd.f32 0.0, %v1376
        %v1378 = vpop.f32.mrf.mxu0
        %v1379 = vadd.f32 0.0, %v1378
        %1380 = vmatmul.bf16.gmra.mxu0 %v1075
        %v1381 = vpop.f32.mrf.mxu0
        %v1382 = vadd.f32 0.0, %v1381
        %v1383 = vpop.f32.mrf.mxu0
        %v1384 = vadd.f32 0.0, %v1383
        %1385 = vmatmul.bf16.gmra.mxu0 %v1337
        %v1386 = vpop.f32.mrf.mxu0
        %v1387 = vadd.f32 0.0, %v1386
        %v1388 = vpop.f32.mrf.mxu0
        %v1389 = vadd.f32 0.0, %v1388
        %1390 = vdwg.mxu0
        %v1391 = vadd.f32 %v1307, %v1352
        %v1392 = vadd.f32 %v1308, %v1354
        %v1393 = vadd.f32 %v1309, %v1357
        %v1394 = vadd.f32 %v1310, %v1359
        %v1395 = vadd.f32 %v1311, %v1362
        %v1396 = vadd.f32 %v1312, %v1364
        %v1397 = vadd.f32 %v1313, %v1367
        %v1398 = vadd.f32 %v1314, %v1369
        %v1399 = vadd.f32 %v1315, %v1372
        %v1400 = vadd.f32 %v1316, %v1374
        %v1401 = vadd.f32 %v1317, %v1377
        %v1402 = vadd.f32 %v1318, %v1379
        %v1403 = vadd.f32 %v1319, %v1382
        %v1404 = vadd.f32 %v1320, %v1384
        %v1405 = vadd.f32 %v1321, %v1387
        %v1406 = vadd.f32 %v1322, %v1389
        %v1407 = vpack.c.bf16 %v1391, %v1391
        %v1408 = vpack.c.bf16 %v1392, %v1392
        %v1409 = vpack.c.bf16 %v1393, %v1393
        %v1410 = vpack.c.bf16 %v1394, %v1394
        %v1411 = vpack.c.bf16 %v1395, %v1395
        %v1412 = vpack.c.bf16 %v1396, %v1396
        %v1413 = vpack.c.bf16 %v1397, %v1397
        %v1414 = vpack.c.bf16 %v1398, %v1398
        %v1415 = vpack.c.bf16 %v1399, %v1399
        %v1416 = vpack.c.bf16 %v1400, %v1400
        %v1417 = vpack.c.bf16 %v1401, %v1401
        %v1418 = vpack.c.bf16 %v1402, %v1402
        %v1419 = vpack.c.bf16 %v1403, %v1403
        %v1420 = vpack.c.bf16 %v1404, %v1404
        %v1421 = vpack.c.bf16 %v1405, %v1405
        %v1422 = vpack.c.bf16 %v1406, %v1406
        %1423 = vst [vmem:[%s220] sm:$0xf] %v1407
        %1424 = vst [vmem:[%s220 + $0x4] sm:$0xf] %v1408
        %1425 = vst [vmem:[%s220 + $0x8] sm:$0xf] %v1409
        %1426 = vst [vmem:[%s220 + $0xc] sm:$0xf] %v1410
        %1427 = vst [vmem:[%s220 + $0x10] sm:$0xf] %v1411
        %1428 = vst [vmem:[%s220 + $0x14] sm:$0xf] %v1412
        %1429 = vst [vmem:[%s220 + $0x18] sm:$0xf] %v1413
        %1430 = vst [vmem:[%s220 + $0x1c] sm:$0xf] %v1414
        %1431 = vst [vmem:[%s220 + $0x20] sm:$0xf] %v1415
        %1432 = vst [vmem:[%s220 + $0x24] sm:$0xf] %v1416
        %1433 = vst [vmem:[%s220 + $0x28] sm:$0xf] %v1417
        %1434 = vst [vmem:[%s220 + $0x2c] sm:$0xf] %v1418
        %1435 = vst [vmem:[%s220 + $0x30] sm:$0xf] %v1419
        %1436 = vst [vmem:[%s220 + $0x34] sm:$0xf] %v1420
        %1437 = vst [vmem:[%s220 + $0x38] sm:$0xf] %v1421
        %1438 = vst [vmem:[%s220 + $0x3c] sm:$0xf] %v1422
        %v1439 = vld [vmem:[%s226] sm:$0x1]
        %v1440 = vadd.f32 %v1391, %v1392
        %v1441 = vadd.f32 %v1440, %v1393
        %v1442 = vadd.f32 %v1441, %v1394
        %v1443 = vadd.f32 %v1442, %v1395
        %v1444 = vadd.f32 %v1443, %v1396
        %v1445 = vadd.f32 %v1444, %v1397
        %v1446 = vadd.f32 %v1445, %v1398
        %v1447 = vadd.f32 %v1446, %v1399
        %v1448 = vadd.f32 %v1447, %v1400
        %v1449 = vadd.f32 %v1448, %v1401
        %v1450 = vadd.f32 %v1449, %v1402
        %v1451 = vadd.f32 %v1450, %v1403
        %v1452 = vadd.f32 %v1451, %v1404
        %v1453 = vadd.f32 %v1452, %v1405
        %v1454 = vadd.f32 %v1453, %v1406
        %v1455 = vrot.slane %v1454, 4
        %v1456 = vadd.f32 %v1454, %v1455
        %v1457 = vrot.slane %v1456, 2
        %v1458 = vadd.f32 %v1456, %v1457
        %v1459 = vrot.slane %v1458, 1
        %v1460 = vadd.f32 %v1458, %v1459
        %v1461 = vadd.f32 %v1439, %v1460
        %1462 = vst [vmem:[%s226] sm:$0x1] %v1461
        %v1463 = vld [vmem:[%s232] sm:$0x1]
        %v1464 = vmul.f32 %v1391, %v1391
        %v1465 = vmul.f32 %v1392, %v1392
        %v1466 = vmul.f32 %v1393, %v1393
        %v1467 = vmul.f32 %v1394, %v1394
        %v1468 = vmul.f32 %v1395, %v1395
        %v1469 = vmul.f32 %v1396, %v1396
        %v1470 = vmul.f32 %v1397, %v1397
        %v1471 = vmul.f32 %v1398, %v1398
        %v1472 = vmul.f32 %v1399, %v1399
        %v1473 = vmul.f32 %v1400, %v1400
        %v1474 = vmul.f32 %v1401, %v1401
        %v1475 = vmul.f32 %v1402, %v1402
        %v1476 = vmul.f32 %v1403, %v1403
        %v1477 = vmul.f32 %v1404, %v1404
        %v1478 = vmul.f32 %v1405, %v1405
        %v1479 = vmul.f32 %v1406, %v1406
        %v1480 = vadd.f32 %v1464, %v1465
        %v1481 = vadd.f32 %v1480, %v1466
        %v1482 = vadd.f32 %v1481, %v1467
        %v1483 = vadd.f32 %v1482, %v1468
        %v1484 = vadd.f32 %v1483, %v1469
        %v1485 = vadd.f32 %v1484, %v1470
        %v1486 = vadd.f32 %v1485, %v1471
        %v1487 = vadd.f32 %v1486, %v1472
        %v1488 = vadd.f32 %v1487, %v1473
        %v1489 = vadd.f32 %v1488, %v1474
        %v1490 = vadd.f32 %v1489, %v1475
        %v1491 = vadd.f32 %v1490, %v1476
        %v1492 = vadd.f32 %v1491, %v1477
        %v1493 = vadd.f32 %v1492, %v1478
        %v1494 = vadd.f32 %v1493, %v1479
        %v1495 = vrot.slane %v1494, 4
        %v1496 = vadd.f32 %v1494, %v1495
        %v1497 = vrot.slane %v1496, 2
        %v1498 = vadd.f32 %v1496, %v1497
        %v1499 = vrot.slane %v1498, 1
        %v1500 = vadd.f32 %v1498, %v1499
        %v1501 = vadd.f32 %v1463, %v1500
        %1502 = vst [vmem:[%s232] sm:$0x1] %v1501
        %s1503 = sand.u32 %s95, 1
        %s1504 = scalar_lea.sflag [#allocation3], %s1503
        %s1505 = sand.u32 %s95, 1
        %s1506 = smul.addr %s1505, 64
        %s1507 = scalar_lea.vmem [#allocation2], %s1506
        %s1508 = sand.u32 %s22, 1
        %s1509 = scalar_lea.sflag [#allocation5], %s1508
        %s1510 = sand.u32 %s121, 1
        %s1511 = scalar_lea.vmem [#allocation4], %s1510
        %s1512 = sand.u32 %s22, 1
        %s1513 = scalar_lea.sflag [#allocation5], %s1512
        %s1514 = sand.u32 %s147, 1
        %s1515 = scalar_lea.vmem [#allocation6], %s1514
        // Predicated region
        $region33: #{tpu_custom_call.1} parent=27 // pred_check
          %p1516 = pneg %p105
        $region34: #{tpu_custom_call.1} parent=27 // pred_check_branch
          %1518 = sbr.rel (%p1516) target = $region36
        $region35: #{tpu_custom_call.1} parent=27 // pred_region
          %s1519 = smul.u32 %s26, 2
          %s1520 = sadd.s32 %s1519, %s27
          %s1521 = smul.u32 16, %s1520
          %1523 = vsyncadd %s1504, 0
          %s1524 = smul.addr %s1521, 4
          %s1525 = scalar_lea.hbm %s2, %s1524
          %s1526 = sshll.u32 %s1507, 4
          %s1527 = int_to_ptr.vmem [resolvable:$true] %s1526
          %s1528 = sshll.u32 %s1525, 4
          %s1529 = int_to_ptr.hbm [resolvable:$true] %s1528
          %1534 = dma.vmem_to_hbm [thread:$0]  %s1527, 1024, %s1529, %s1504, 64, 64, 4
        $region36: #{tpu_custom_call.1} parent=27 // pred_fallthru
          _
        // Predicated region
        $region37: #{tpu_custom_call.1} parent=27 // pred_check
          %p1535 = pneg %p131
        $region38: #{tpu_custom_call.1} parent=27 // pred_check_branch
          %1537 = sbr.rel (%p1535) target = $region40
        $region39: #{tpu_custom_call.1} parent=27 // pred_region
          %1539 = vsyncadd %s1509, 0
          %s1540 = scalar_lea.hbm %s3, %s26
          %s1542 = sshll.u32 %s1511, 4
          %s1543 = int_to_ptr.vmem [resolvable:$true] %s1542
          %s1544 = sshll.u32 %s1540, 4
          %s1545 = int_to_ptr.hbm [resolvable:$true] %s1544
          %1547 = dma.vmem_to_hbm [thread:$0]  %s1543, 16, %s1545, %s1509
        $region40: #{tpu_custom_call.1} parent=27 // pred_fallthru
          _
        // Predicated region
        $region41: #{tpu_custom_call.1} parent=27 // pred_check
          %p1548 = pneg %p157
        $region42: #{tpu_custom_call.1} parent=27 // pred_check_branch
          %1550 = sbr.rel (%p1548) target = $region44
        $region43: #{tpu_custom_call.1} parent=27 // pred_region
          %1552 = vsyncadd %s1513, 0
          %s1553 = scalar_lea.hbm %s4, %s26
          %s1555 = sshll.u32 %s1515, 4
          %s1556 = int_to_ptr.vmem [resolvable:$true] %s1555
          %s1557 = sshll.u32 %s1553, 4
          %s1558 = int_to_ptr.hbm [resolvable:$true] %s1557
          %1560 = dma.vmem_to_hbm [thread:$0]  %s1556, 16, %s1558, %s1513
        $region44: #{tpu_custom_call.1} parent=27 // pred_fallthru
          _
      $region28: #{tpu_custom_call.1} parent=5 // pred_fallthru
        _
      %p1561 = scmp.le.s32.totalorder 2, %s17
      // Predicated region
      $region45: #{tpu_custom_call.1} parent=5 // pred_check
        %p1562 = pneg %p1561
      $region46: #{tpu_custom_call.1} parent=5 // pred_check_branch
        %1564 = sbr.rel (%p1562) target = $region48
      $region47: #{tpu_custom_call.1} parent=5 // pred_region
        %s1565 = ssub.s32 %s17, 2
        // Predicated region
        $region49: #{tpu_custom_call.1} parent=47 // pred_check
          %p1566 = pneg %p111
        $region50: #{tpu_custom_call.1} parent=47 // pred_check_branch
          %1568 = sbr.rel (%p1566) target = $region52
        $region51: #{tpu_custom_call.1} parent=47 // pred_region
          %s1569 = sand.u32 %s96, 1
          %s1570 = scalar_lea.sflag [#allocation3], %s1569
          %s1571 = sand.u32 %s96, 1
          %s1572 = smul.addr %s1571, 64
          %s1573 = scalar_lea.vmem [#allocation2], %s1572
          %1575 = dma.done %s1570, 1024
        $region52: #{tpu_custom_call.1} parent=47 // pred_fallthru
          _
        // Predicated region
        $region53: #{tpu_custom_call.1} parent=47 // pred_check
          %p1576 = pneg %p137
        $region54: #{tpu_custom_call.1} parent=47 // pred_check_branch
          %1578 = sbr.rel (%p1576) target = $region56
        $region55: #{tpu_custom_call.1} parent=47 // pred_region
          %s1579 = sand.u32 %s23, 1
          %s1580 = scalar_lea.sflag [#allocation5], %s1579
          %s1581 = sand.u32 %s122, 1
          %s1582 = scalar_lea.vmem [#allocation4], %s1581
          %1584 = dma.done %s1580, 16
        $region56: #{tpu_custom_call.1} parent=47 // pred_fallthru
          _
        // Predicated region
        $region57: #{tpu_custom_call.1} parent=47 // pred_check
          %p1585 = pneg %p163
        $region58: #{tpu_custom_call.1} parent=47 // pred_check_branch
          %1587 = sbr.rel (%p1585) target = $region60
        $region59: #{tpu_custom_call.1} parent=47 // pred_region
          %s1588 = sand.u32 %s23, 1
          %s1589 = scalar_lea.sflag [#allocation5], %s1588
          %s1590 = sand.u32 %s148, 1
          %s1591 = scalar_lea.vmem [#allocation6], %s1590
          %1593 = dma.done %s1589, 16
        $region60: #{tpu_custom_call.1} parent=47 // pred_fallthru
          _
      $region48: #{tpu_custom_call.1} parent=5 // pred_fallthru
        _
    $region6: #{tpu_custom_call.1} parent=1 // loop_footer
      %s21 = sadd.s32 1, %s17
    $region7: #{tpu_custom_call.1} parent=1 // loop_footer_branch
      %16 = sbr.rel target = $region3
    $region8: #{tpu_custom_call.1} parent=1 // loop_exit
      _
    %1594 = vsyncpa [#allocation3], 1
    %s1595 = scalar_lea.sflag [#allocation3], 1
    %1596 = vsyncpa %s1595, 1
    %1597 = vsyncpa [#allocation5], 1
    %s1598 = scalar_lea.sflag [#allocation5], 1
    %1599 = vsyncpa %s1598, 1

</llo_original>
